<compile_context>
chip_gen: v6e
topology: v6e:2x2x1
jax: 0.10.0
libtpu: 0.0.40
codegen_flags: <defaults>
</compile_context>

<pallas_src>
import functools

import jax
import jax.numpy as jnp
from jax.experimental import pallas as pl
from jax.experimental.pallas import tpu as pltpu


def mha_kernel(x_ref, wqkv_ref, bqkv_ref, wo_ref, bo_ref, o_ref, ctx_ref,
               *, block_b, seq_len, num_heads, head_dim):
    """One grid step == `block_b` batch elements, flattened to (block_b*S, E) rows."""
    embed_dim = num_heads * head_dim
    x = x_ref[...]                                           # (block_b*S, E)

    # Fused Q|K|V projection: a single wide MXU matmul, columns = [Q | K | V].
    qkv = jnp.dot(x, wqkv_ref[...],
                  preferred_element_type=jnp.float32) + bqkv_ref[...]   # (rows, 3E)

    scale = jnp.float32(1.0) / jnp.sqrt(jnp.float32(head_dim))

    for h in range(num_heads):                               # static loop over heads
        lo = h * head_dim
        # Split the batch tile back out as a leading batch dim (tile-aligned reshape:
        # S is a multiple of 8), so attention never mixes batch elements.
        q_h = (qkv[:, lo:lo + head_dim] * scale).reshape(block_b, seq_len, head_dim)
        k_h = qkv[:, embed_dim + lo:embed_dim + lo + head_dim].reshape(
            block_b, seq_len, head_dim)
        v_h = qkv[:, 2 * embed_dim + lo:2 * embed_dim + lo + head_dim].reshape(
            block_b, seq_len, head_dim)

        # Batched QK^T via contraction on the last dims -- no transpose materialized.
        scores = jnp.einsum("bqd,bkd->bqk", q_h, k_h,
                            preferred_element_type=jnp.float32)          # (b, S, S)

        # Numerically stable softmax over the key dim; reciprocal on the EUP.
        m = jnp.max(scores, axis=-1, keepdims=True)
        e = jnp.exp(scores - m)
        denom = jnp.sum(e, axis=-1, keepdims=True)
        attn = e * pl.reciprocal(denom, approx=True)

        ctx_h = jnp.einsum("bqk,bkd->bqd", attn, v_h,
                           preferred_element_type=jnp.float32)           # (b, S, Dh)

        # Static column store into the context scratch (replaces jnp.concatenate).
        ctx_ref[:, lo:lo + head_dim] = ctx_h.reshape(block_b * seq_len, head_dim)

    # Output projection over the whole batch tile.
    out = jnp.dot(ctx_ref[...], wo_ref[...],
                  preferred_element_type=jnp.float32) + bo_ref[...]
    o_ref[...] = out.astype(o_ref.dtype)


def multi_head_attention(x, params, num_heads, *, block_b=None):
    """x: (B, S, E) float32. params: torch nn.Linear convention (W: (out,in), b: (out,))."""
    B, S, E = x.shape
    head_dim = E // num_heads
    if block_b is None:
        block_b = B                    # toy sizes: whole batch in one grid step
    assert B % block_b == 0
    rows = block_b * S

    # Fuse and pre-transpose weights so the kernel computes x @ W^T + b.
    wqkv = jnp.concatenate([params["wq"].T, params["wk"].T, params["wv"].T], axis=1)  # (E, 3E)
    bqkv = jnp.concatenate([params["bq"], params["bk"], params["bv"]]).reshape(1, 3 * E)
    wo_t = params["wo"].T                                    # (E, E)
    bo = params["bo"].reshape(1, E)

    x2d = x.reshape(B * S, E)                                # batch-major rows

    kernel = functools.partial(mha_kernel, block_b=block_b, seq_len=S,
                               num_heads=num_heads, head_dim=head_dim)

    out2d = pl.pallas_call(
        kernel,
        out_shape=jax.ShapeDtypeStruct((B * S, E), x.dtype),
        grid_spec=pltpu.PrefetchScalarGridSpec(
            num_scalar_prefetch=0,
            grid=(B // block_b,),
            in_specs=[
                pl.BlockSpec((rows, E), lambda i: (i, 0)),        # x rows for this batch tile
                pl.BlockSpec((E, 3 * E), lambda i: (0, 0)),       # fused W_qkv^T (resident)
                pl.BlockSpec((1, 3 * E), lambda i: (0, 0)),       # fused b_qkv
                pl.BlockSpec((E, E), lambda i: (0, 0)),           # W_o^T (resident)
                pl.BlockSpec((1, E), lambda i: (0, 0)),           # b_o
            ],
            out_specs=pl.BlockSpec((rows, E), lambda i: (i, 0)),
            scratch_shapes=[pltpu.VMEM((rows, E), jnp.float32)],  # per-tile context
        ),
        compiler_params=pltpu.CompilerParams(
            dimension_semantics=("parallel",)),
    )(x2d, wqkv, bqkv, wo_t, bo)

    return out2d.reshape(B, S, E)


def mha_reference(x, params, num_heads):
    """Pure-JAX replica of the PyTorch forward, for a correctness check."""
    B, S, E = x.shape
    Dh = E // num_heads

    def lin(x, w, b):  # torch Linear: x @ W.T + b
        return x @ w.T + b

    Q = lin(x, params["wq"], params["bq"]).reshape(B, S, num_heads, Dh).transpose(0, 2, 1, 3)
    K = lin(x, params["wk"], params["bk"]).reshape(B, S, num_heads, Dh).transpose(0, 2, 1, 3)
    V = lin(x, params["wv"], params["bv"]).reshape(B, S, num_heads, Dh).transpose(0, 2, 1, 3)
    scores = jnp.einsum("bhqd,bhkd->bhqk", Q, K) / jnp.sqrt(jnp.float32(Dh))
    attn = jax.nn.softmax(scores, axis=-1)
    ctx = jnp.einsum("bhqk,bhkd->bhqd", attn, V).transpose(0, 2, 1, 3).reshape(B, S, E)
    return lin(ctx, params["wo"], params["bo"])


if __name__ == "__main__":
    B, S, E, H = 2, 8, 32, 4   # batch, seq, embed_dim, num_heads  (head_dim = 8)

    key = jax.random.PRNGKey(0)
    keys = jax.random.split(key, 9)

    # Deterministic synthetic parameters (torch nn.Linear convention: W (out,in), b (out,)).
    params = {
        "wq": jax.random.normal(keys[0], (E, E), jnp.float32) * 0.1,
        "bq": jax.random.normal(keys[1], (E,), jnp.float32) * 0.1,
        "wk": jax.random.normal(keys[2], (E, E), jnp.float32) * 0.1,
        "bk": jax.random.normal(keys[3], (E,), jnp.float32) * 0.1,
        "wv": jax.random.normal(keys[4], (E, E), jnp.float32) * 0.1,
        "bv": jax.random.normal(keys[5], (E,), jnp.float32) * 0.1,
        "wo": jax.random.normal(keys[6], (E, E), jnp.float32) * 0.1,
        "bo": jax.random.normal(keys[7], (E,), jnp.float32) * 0.1,
    }
    x = jax.random.normal(keys[8], (B, S, E), jnp.float32)

    out = multi_head_attention(x, params, H)
    out = jax.block_until_ready(out)

    ref = mha_reference(x, params, H)
    assert out.shape == (B, S, E)
    # Tolerance loosened slightly from 1e-4 because of the EUP approximate reciprocal
    # in the softmax denominator (error << 2e-3 for these magnitudes).
    assert jnp.allclose(out, ref, atol=2e-3, rtol=2e-3), "Pallas output mismatch vs reference"

    print("KERNEL_OK")
</pallas_src>

<mosaic_0001>
module attributes {stable_mosaic.version = 11 : i64} {
  func.func @mha_kernel(%arg0: i32, %arg1: memref<16x32xf32, #tpu.memory_space<vmem>>, %arg2: memref<32x96xf32, #tpu.memory_space<vmem>>, %arg3: memref<1x96xf32, #tpu.memory_space<vmem>>, %arg4: memref<32x32xf32, #tpu.memory_space<vmem>>, %arg5: memref<1x32xf32, #tpu.memory_space<vmem>>, %arg6: memref<16x32xf32, #tpu.memory_space<vmem>>, %arg7: memref<16x32xf32, #tpu.memory_space<vmem>>) attributes {dimension_semantics = [#tpu.dimension_semantics<parallel>], iteration_bounds = array<i64: 1>, scalar_prefetch = 0 : i64, scratch_operands = 1 : i64, tpu.core_type = #tpu.core_type<tc>, window_params = [{transform_indices = @transform_0, window_bounds = array<i64: 16, 32>}, {pipeline_mode = #tpu.pipeline_mode<synchronous>, transform_indices = @transform_1, window_bounds = array<i64: 32, 96>}, {pipeline_mode = #tpu.pipeline_mode<synchronous>, transform_indices = @transform_2, window_bounds = array<i64: 1, 96>}, {pipeline_mode = #tpu.pipeline_mode<synchronous>, transform_indices = @transform_3, window_bounds = array<i64: 32, 32>}, {pipeline_mode = #tpu.pipeline_mode<synchronous>, transform_indices = @transform_4, window_bounds = array<i64: 1, 32>}, {transform_indices = @transform_5, window_bounds = array<i64: 16, 32>}]} {
    %c0 = arith.constant 0 : index
    %c0_0 = arith.constant 0 : index
    %0 = vector.load %arg1[%c0, %c0_0] : memref<16x32xf32, #tpu.memory_space<vmem>>, vector<16x32xf32>
    %c0_1 = arith.constant 0 : index
    %c0_2 = arith.constant 0 : index
    %1 = vector.load %arg2[%c0_1, %c0_2] : memref<32x96xf32, #tpu.memory_space<vmem>>, vector<32x96xf32>
    %cst = arith.constant dense<0.000000e+00> : vector<16x96xf32>
    %2 = tpu.matmul %0, %1, %cst {dimension_numbers = #tpu.dot_dimension_numbers<[1], [0], [0], [1], [0, 0, 1, 1], [], []>} : vector<16x32xf32>, vector<32x96xf32>, vector<16x96xf32> -> vector<16x96xf32>
    %c0_3 = arith.constant 0 : index
    %c0_4 = arith.constant 0 : index
    %3 = vector.load %arg3[%c0_3, %c0_4] : memref<1x96xf32, #tpu.memory_space<vmem>>, vector<1x96xf32>
    %4 = vector.broadcast %3 : vector<1x96xf32> to vector<16x96xf32>
    %5 = arith.addf %2, %4 : vector<16x96xf32>
    %cst_5 = arith.constant 8.000000e+00 : f32
    %6 = math.sqrt %cst_5 : f32
    %cst_6 = arith.constant 1.000000e+00 : f32
    %7 = arith.divf %cst_6, %6 : f32
    %8 = vector.extract_strided_slice %5 {offsets = [0, 0], sizes = [16, 8], strides = [1, 1]} : vector<16x96xf32> to vector<16x8xf32>
    %9 = vector.broadcast %7 : f32 to vector<16x8xf32>
    %10 = arith.mulf %8, %9 : vector<16x8xf32>
    %11 = vector.shape_cast %10 : vector<16x8xf32> to vector<2x8x8xf32>
    %12 = vector.extract_strided_slice %5 {offsets = [0, 32], sizes = [16, 8], strides = [1, 1]} : vector<16x96xf32> to vector<16x8xf32>
    %13 = vector.shape_cast %12 : vector<16x8xf32> to vector<2x8x8xf32>
    %14 = vector.extract_strided_slice %5 {offsets = [0, 64], sizes = [16, 8], strides = [1, 1]} : vector<16x96xf32> to vector<16x8xf32>
    %15 = vector.shape_cast %14 : vector<16x8xf32> to vector<2x8x8xf32>
    "tpu.trace_start"() <{level = 10 : i32, message = "bqd,bkd->bqk"}> : () -> ()
    %cst_7 = arith.constant dense<0.000000e+00> : vector<2x8x8xf32>
    %16 = tpu.matmul %11, %13, %cst_7 {dimension_numbers = #tpu.dot_dimension_numbers<[2], [2], [1], [1], [0, 0, 0, 1, 1, 1], [0], [0]>} : vector<2x8x8xf32>, vector<2x8x8xf32>, vector<2x8x8xf32> -> vector<2x8x8xf32>
    "tpu.trace_stop"() : () -> ()
    %cst_8 = arith.constant dense<0xFF800000> : vector<2x8xf32>
    %17 = vector.multi_reduction <maximumf>, %16, %cst_8 [2] : vector<2x8x8xf32> to vector<2x8xf32>
    %18 = vector.shape_cast %17 : vector<2x8xf32> to vector<2x8x1xf32>
    %19 = vector.broadcast %18 : vector<2x8x1xf32> to vector<2x8x8xf32>
    %20 = arith.subf %16, %19 : vector<2x8x8xf32>
    %21 = math.exp %20 : vector<2x8x8xf32>
    %cst_9 = arith.constant dense<0.000000e+00> : vector<2x8xf32>
    %22 = vector.multi_reduction <add>, %21, %cst_9 [2] : vector<2x8x8xf32> to vector<2x8xf32>
    %23 = vector.shape_cast %22 : vector<2x8xf32> to vector<2x8x1xf32>
    %24 = tpu.reciprocal %23 {approx = true} : vector<2x8x1xf32> -> vector<2x8x1xf32>
    %25 = vector.broadcast %24 : vector<2x8x1xf32> to vector<2x8x8xf32>
    %26 = arith.mulf %21, %25 : vector<2x8x8xf32>
    "tpu.trace_start"() <{level = 10 : i32, message = "bqk,bkd->bqd"}> : () -> ()
    %cst_10 = arith.constant dense<0.000000e+00> : vector<2x8x8xf32>
    %27 = tpu.matmul %26, %15, %cst_10 {dimension_numbers = #tpu.dot_dimension_numbers<[2], [1], [1], [2], [0, 0, 0, 1, 1, 2], [0], [0]>} : vector<2x8x8xf32>, vector<2x8x8xf32>, vector<2x8x8xf32> -> vector<2x8x8xf32>
    "tpu.trace_stop"() : () -> ()
    %28 = vector.shape_cast %27 : vector<2x8x8xf32> to vector<16x8xf32>
    %c0_11 = arith.constant 0 : index
    %c0_12 = arith.constant 0 : index
    %29 = vector.load %arg7[%c0_11, %c0_12] : memref<16x32xf32, #tpu.memory_space<vmem>>, vector<16x8xf32>
    tpu.vector_store %arg7[%c0_11, %c0_12], %28 {strides = array<i32>} : memref<16x32xf32, #tpu.memory_space<vmem>>, vector<16x8xf32>,
    %30 = vector.extract_strided_slice %5 {offsets = [0, 8], sizes = [16, 8], strides = [1, 1]} : vector<16x96xf32> to vector<16x8xf32>
    %31 = vector.broadcast %7 : f32 to vector<16x8xf32>
    %32 = arith.mulf %30, %31 : vector<16x8xf32>
    %33 = vector.shape_cast %32 : vector<16x8xf32> to vector<2x8x8xf32>
    %34 = vector.extract_strided_slice %5 {offsets = [0, 40], sizes = [16, 8], strides = [1, 1]} : vector<16x96xf32> to vector<16x8xf32>
    %35 = vector.shape_cast %34 : vector<16x8xf32> to vector<2x8x8xf32>
    %36 = vector.extract_strided_slice %5 {offsets = [0, 72], sizes = [16, 8], strides = [1, 1]} : vector<16x96xf32> to vector<16x8xf32>
    %37 = vector.shape_cast %36 : vector<16x8xf32> to vector<2x8x8xf32>
    "tpu.trace_start"() <{level = 10 : i32, message = "bqd,bkd->bqk"}> : () -> ()
    %cst_13 = arith.constant dense<0.000000e+00> : vector<2x8x8xf32>
    %38 = tpu.matmul %33, %35, %cst_13 {dimension_numbers = #tpu.dot_dimension_numbers<[2], [2], [1], [1], [0, 0, 0, 1, 1, 1], [0], [0]>} : vector<2x8x8xf32>, vector<2x8x8xf32>, vector<2x8x8xf32> -> vector<2x8x8xf32>
    "tpu.trace_stop"() : () -> ()
    %cst_14 = arith.constant dense<0xFF800000> : vector<2x8xf32>
    %39 = vector.multi_reduction <maximumf>, %38, %cst_14 [2] : vector<2x8x8xf32> to vector<2x8xf32>
    %40 = vector.shape_cast %39 : vector<2x8xf32> to vector<2x8x1xf32>
    %41 = vector.broadcast %40 : vector<2x8x1xf32> to vector<2x8x8xf32>
    %42 = arith.subf %38, %41 : vector<2x8x8xf32>
    %43 = math.exp %42 : vector<2x8x8xf32>
    %cst_15 = arith.constant dense<0.000000e+00> : vector<2x8xf32>
    %44 = vector.multi_reduction <add>, %43, %cst_15 [2] : vector<2x8x8xf32> to vector<2x8xf32>
    %45 = vector.shape_cast %44 : vector<2x8xf32> to vector<2x8x1xf32>
    %46 = tpu.reciprocal %45 {approx = true} : vector<2x8x1xf32> -> vector<2x8x1xf32>
    %47 = vector.broadcast %46 : vector<2x8x1xf32> to vector<2x8x8xf32>
    %48 = arith.mulf %43, %47 : vector<2x8x8xf32>
    "tpu.trace_start"() <{level = 10 : i32, message = "bqk,bkd->bqd"}> : () -> ()
    %cst_16 = arith.constant dense<0.000000e+00> : vector<2x8x8xf32>
    %49 = tpu.matmul %48, %37, %cst_16 {dimension_numbers = #tpu.dot_dimension_numbers<[2], [1], [1], [2], [0, 0, 0, 1, 1, 2], [0], [0]>} : vector<2x8x8xf32>, vector<2x8x8xf32>, vector<2x8x8xf32> -> vector<2x8x8xf32>
    "tpu.trace_stop"() : () -> ()
    %50 = vector.shape_cast %49 : vector<2x8x8xf32> to vector<16x8xf32>
    %c0_17 = arith.constant 0 : index
    %c8 = arith.constant 8 : index
    %51 = vector.load %arg7[%c0_17, %c8] : memref<16x32xf32, #tpu.memory_space<vmem>>, vector<16x8xf32>
    tpu.vector_store %arg7[%c0_17, %c8], %50 {strides = array<i32>} : memref<16x32xf32, #tpu.memory_space<vmem>>, vector<16x8xf32>,
    %52 = vector.extract_strided_slice %5 {offsets = [0, 16], sizes = [16, 8], strides = [1, 1]} : vector<16x96xf32> to vector<16x8xf32>
    %53 = vector.broadcast %7 : f32 to vector<16x8xf32>
    %54 = arith.mulf %52, %53 : vector<16x8xf32>
    %55 = vector.shape_cast %54 : vector<16x8xf32> to vector<2x8x8xf32>
    %56 = vector.extract_strided_slice %5 {offsets = [0, 48], sizes = [16, 8], strides = [1, 1]} : vector<16x96xf32> to vector<16x8xf32>
    %57 = vector.shape_cast %56 : vector<16x8xf32> to vector<2x8x8xf32>
    %58 = vector.extract_strided_slice %5 {offsets = [0, 80], sizes = [16, 8], strides = [1, 1]} : vector<16x96xf32> to vector<16x8xf32>
    %59 = vector.shape_cast %58 : vector<16x8xf32> to vector<2x8x8xf32>
    "tpu.trace_start"() <{level = 10 : i32, message = "bqd,bkd->bqk"}> : () -> ()
    %cst_18 = arith.constant dense<0.000000e+00> : vector<2x8x8xf32>
    %60 = tpu.matmul %55, %57, %cst_18 {dimension_numbers = #tpu.dot_dimension_numbers<[2], [2], [1], [1], [0, 0, 0, 1, 1, 1], [0], [0]>} : vector<2x8x8xf32>, vector<2x8x8xf32>, vector<2x8x8xf32> -> vector<2x8x8xf32>
    "tpu.trace_stop"() : () -> ()
    %cst_19 = arith.constant dense<0xFF800000> : vector<2x8xf32>
    %61 = vector.multi_reduction <maximumf>, %60, %cst_19 [2] : vector<2x8x8xf32> to vector<2x8xf32>
    %62 = vector.shape_cast %61 : vector<2x8xf32> to vector<2x8x1xf32>
    %63 = vector.broadcast %62 : vector<2x8x1xf32> to vector<2x8x8xf32>
    %64 = arith.subf %60, %63 : vector<2x8x8xf32>
    %65 = math.exp %64 : vector<2x8x8xf32>
    %cst_20 = arith.constant dense<0.000000e+00> : vector<2x8xf32>
    %66 = vector.multi_reduction <add>, %65, %cst_20 [2] : vector<2x8x8xf32> to vector<2x8xf32>
    %67 = vector.shape_cast %66 : vector<2x8xf32> to vector<2x8x1xf32>
    %68 = tpu.reciprocal %67 {approx = true} : vector<2x8x1xf32> -> vector<2x8x1xf32>
    %69 = vector.broadcast %68 : vector<2x8x1xf32> to vector<2x8x8xf32>
    %70 = arith.mulf %65, %69 : vector<2x8x8xf32>
    "tpu.trace_start"() <{level = 10 : i32, message = "bqk,bkd->bqd"}> : () -> ()
    %cst_21 = arith.constant dense<0.000000e+00> : vector<2x8x8xf32>
    %71 = tpu.matmul %70, %59, %cst_21 {dimension_numbers = #tpu.dot_dimension_numbers<[2], [1], [1], [2], [0, 0, 0, 1, 1, 2], [0], [0]>} : vector<2x8x8xf32>, vector<2x8x8xf32>, vector<2x8x8xf32> -> vector<2x8x8xf32>
    "tpu.trace_stop"() : () -> ()
    %72 = vector.shape_cast %71 : vector<2x8x8xf32> to vector<16x8xf32>
    %c0_22 = arith.constant 0 : index
    %c16 = arith.constant 16 : index
    %73 = vector.load %arg7[%c0_22, %c16] : memref<16x32xf32, #tpu.memory_space<vmem>>, vector<16x8xf32>
    tpu.vector_store %arg7[%c0_22, %c16], %72 {strides = array<i32>} : memref<16x32xf32, #tpu.memory_space<vmem>>, vector<16x8xf32>,
    %74 = vector.extract_strided_slice %5 {offsets = [0, 24], sizes = [16, 8], strides = [1, 1]} : vector<16x96xf32> to vector<16x8xf32>
    %75 = vector.broadcast %7 : f32 to vector<16x8xf32>
    %76 = arith.mulf %74, %75 : vector<16x8xf32>
    %77 = vector.shape_cast %76 : vector<16x8xf32> to vector<2x8x8xf32>
    %78 = vector.extract_strided_slice %5 {offsets = [0, 56], sizes = [16, 8], strides = [1, 1]} : vector<16x96xf32> to vector<16x8xf32>
    %79 = vector.shape_cast %78 : vector<16x8xf32> to vector<2x8x8xf32>
    %80 = vector.extract_strided_slice %5 {offsets = [0, 88], sizes = [16, 8], strides = [1, 1]} : vector<16x96xf32> to vector<16x8xf32>
    %81 = vector.shape_cast %80 : vector<16x8xf32> to vector<2x8x8xf32>
    "tpu.trace_start"() <{level = 10 : i32, message = "bqd,bkd->bqk"}> : () -> ()
    %cst_23 = arith.constant dense<0.000000e+00> : vector<2x8x8xf32>
    %82 = tpu.matmul %77, %79, %cst_23 {dimension_numbers = #tpu.dot_dimension_numbers<[2], [2], [1], [1], [0, 0, 0, 1, 1, 1], [0], [0]>} : vector<2x8x8xf32>, vector<2x8x8xf32>, vector<2x8x8xf32> -> vector<2x8x8xf32>
    "tpu.trace_stop"() : () -> ()
    %cst_24 = arith.constant dense<0xFF800000> : vector<2x8xf32>
    %83 = vector.multi_reduction <maximumf>, %82, %cst_24 [2] : vector<2x8x8xf32> to vector<2x8xf32>
    %84 = vector.shape_cast %83 : vector<2x8xf32> to vector<2x8x1xf32>
    %85 = vector.broadcast %84 : vector<2x8x1xf32> to vector<2x8x8xf32>
    %86 = arith.subf %82, %85 : vector<2x8x8xf32>
    %87 = math.exp %86 : vector<2x8x8xf32>
    %cst_25 = arith.constant dense<0.000000e+00> : vector<2x8xf32>
    %88 = vector.multi_reduction <add>, %87, %cst_25 [2] : vector<2x8x8xf32> to vector<2x8xf32>
    %89 = vector.shape_cast %88 : vector<2x8xf32> to vector<2x8x1xf32>
    %90 = tpu.reciprocal %89 {approx = true} : vector<2x8x1xf32> -> vector<2x8x1xf32>
    %91 = vector.broadcast %90 : vector<2x8x1xf32> to vector<2x8x8xf32>
    %92 = arith.mulf %87, %91 : vector<2x8x8xf32>
    "tpu.trace_start"() <{level = 10 : i32, message = "bqk,bkd->bqd"}> : () -> ()
    %cst_26 = arith.constant dense<0.000000e+00> : vector<2x8x8xf32>
    %93 = tpu.matmul %92, %81, %cst_26 {dimension_numbers = #tpu.dot_dimension_numbers<[2], [1], [1], [2], [0, 0, 0, 1, 1, 2], [0], [0]>} : vector<2x8x8xf32>, vector<2x8x8xf32>, vector<2x8x8xf32> -> vector<2x8x8xf32>
    "tpu.trace_stop"() : () -> ()
    %94 = vector.shape_cast %93 : vector<2x8x8xf32> to vector<16x8xf32>
    %c0_27 = arith.constant 0 : index
    %c24 = arith.constant 24 : index
    %95 = vector.load %arg7[%c0_27, %c24] : memref<16x32xf32, #tpu.memory_space<vmem>>, vector<16x8xf32>
    tpu.vector_store %arg7[%c0_27, %c24], %94 {strides = array<i32>} : memref<16x32xf32, #tpu.memory_space<vmem>>, vector<16x8xf32>,
    %c0_28 = arith.constant 0 : index
    %c0_29 = arith.constant 0 : index
    %96 = vector.load %arg7[%c0_28, %c0_29] : memref<16x32xf32, #tpu.memory_space<vmem>>, vector<16x32xf32>
    %c0_30 = arith.constant 0 : index
    %c0_31 = arith.constant 0 : index
    %97 = vector.load %arg4[%c0_30, %c0_31] : memref<32x32xf32, #tpu.memory_space<vmem>>, vector<32x32xf32>
    %cst_32 = arith.constant dense<0.000000e+00> : vector<16x32xf32>
    %98 = tpu.matmul %96, %97, %cst_32 {dimension_numbers = #tpu.dot_dimension_numbers<[1], [0], [0], [1], [0, 0, 1, 1], [], []>} : vector<16x32xf32>, vector<32x32xf32>, vector<16x32xf32> -> vector<16x32xf32>
    %c0_33 = arith.constant 0 : index
    %c0_34 = arith.constant 0 : index
    %99 = vector.load %arg5[%c0_33, %c0_34] : memref<1x32xf32, #tpu.memory_space<vmem>>, vector<1x32xf32>
    %100 = vector.broadcast %99 : vector<1x32xf32> to vector<16x32xf32>
    %101 = arith.addf %98, %100 : vector<16x32xf32>
    %c0_35 = arith.constant 0 : index
    %c0_36 = arith.constant 0 : index
    %102 = vector.load %arg6[%c0_35, %c0_36] : memref<16x32xf32, #tpu.memory_space<vmem>>, vector<16x32xf32>
    tpu.vector_store %arg6[%c0_35, %c0_36], %101 {strides = array<i32>} : memref<16x32xf32, #tpu.memory_space<vmem>>, vector<16x32xf32>,
    return
  }
  func.func @transform_0(%arg0: i32) -> (i32, i32) {
    %c0_i32 = arith.constant 0 : i32
    %c0_i32_0 = arith.constant 0 : i32
    return %arg0, %c0_i32 : i32, i32
  }
  func.func @transform_1(%arg0: i32) -> (i32, i32) {
    %c0_i32 = arith.constant 0 : i32
    %c0_i32_0 = arith.constant 0 : i32
    %c0_i32_1 = arith.constant 0 : i32
    return %c0_i32, %c0_i32_0 : i32, i32
  }
  func.func @transform_2(%arg0: i32) -> (i32, i32) {
    %c0_i32 = arith.constant 0 : i32
    %c0_i32_0 = arith.constant 0 : i32
    %c0_i32_1 = arith.constant 0 : i32
    return %c0_i32, %c0_i32_0 : i32, i32
  }
  func.func @transform_3(%arg0: i32) -> (i32, i32) {
    %c0_i32 = arith.constant 0 : i32
    %c0_i32_0 = arith.constant 0 : i32
    %c0_i32_1 = arith.constant 0 : i32
    return %c0_i32, %c0_i32_0 : i32, i32
  }
  func.func @transform_4(%arg0: i32) -> (i32, i32) {
    %c0_i32 = arith.constant 0 : i32
    %c0_i32_0 = arith.constant 0 : i32
    %c0_i32_1 = arith.constant 0 : i32
    return %c0_i32, %c0_i32_0 : i32, i32
  }
  func.func @transform_5(%arg0: i32) -> (i32, i32) {
    %c0_i32 = arith.constant 0 : i32
    %c0_i32_0 = arith.constant 0 : i32
    return %arg0, %c0_i32 : i32, i32
  }
}

</mosaic_0001>

<llo_original>
// kernel: tpu_custom_call.1
$region0: #{tpu_custom_call.1}
  #allocation0 [shape = 'u32[]', space=smem, size = 0x4, offset = 0x4, fixed_abs, tag = 'smem constant byte address 0x4 - core index']
  #allocation1 [shape = 'u32[144,128]{1,0:T(1,128)}', space=vmem, size = 0x12000, scoped, tag = 'internal scratch']
  #allocation2 [shape = 'f32[16,32]{1,0:T(8,128)}', space=vmem, size = 0x2000, scoped, tag = 'scratch operand']
  %s0 = inlined_call_operand.hbm [shape: f32[16,32], index: 0, kind: input, shape index: {}]
  %s1 = inlined_call_operand.hbm [shape: f32[32,96], index: 1, kind: input, shape index: {}]
  %s2 = inlined_call_operand.vmem [shape: f32[1,96], index: 2, kind: input, shape index: {}]
  %s3 = inlined_call_operand.hbm [shape: f32[32,32], index: 3, kind: input, shape index: {}]
  %s4 = inlined_call_operand.vmem [shape: f32[1,32], index: 4, kind: input, shape index: {}]
  %s5 = inlined_call_operand.hbm [shape: f32[16,32], index: 5, kind: output, shape index: {}]
  %s6 = sld [smem:[#allocation0]]
  $region42: #{tpu_custom_call.1} parent=0
    _
  %s8 = ssub.s32 1, %s6
  %s9 = scalar_select 0, %s8, %s6
  $region1: #{tpu_custom_call.1} parent=0
    #allocation3 [shape = 'u8[8192]{0}', space=vmem, size = 0x2000, scoped, tag = 'input window, operand 0, single buffered']
    #allocation4 [shape = 's32[1]{0}', space=sflag, size = 0x4, scoped, tag = 'scoped memory for tpu_custom_call.1']
    #allocation5 [shape = 's32[1]{0}', space=sflag, size = 0x4, scoped, tag = 'scoped memory for tpu_custom_call.1']
    #allocation6 [shape = 'u8[16384]{0}', space=vmem, size = 0x4000, scoped, tag = 'input window, operand 1, single buffered']
    #allocation7 [shape = 's32[1]{0}', space=sflag, size = 0x4, scoped, tag = 'scoped memory for tpu_custom_call.1']
    #allocation8 [shape = 'u8[16384]{0}', space=vmem, size = 0x4000, scoped, tag = 'input window, operand 3, single buffered']
    #allocation9 [shape = 'u8[8192]{0}', space=vmem, size = 0x2000, scoped, tag = 'output window, operand 0, single buffered']
    %10 = vsyncpa [#allocation4], 0
    %11 = vsyncpa [#allocation7], 0
    %12 = vsyncpa [#allocation5], 0
    // Predicated region
    $region2: #{tpu_custom_call.1} parent=1 // pred_check
      _
    $region3: #{tpu_custom_call.1} parent=1 // pred_check_branch
      %14 = sbr.rel (0) target = $region5
    $region4: #{tpu_custom_call.1} parent=1 // pred_region
      %s16 = ssub.s32 256, 256
      %17 = vsyncadd [#allocation4], %s16
      %s18 = sshll.u32 [#allocation3], 4
      %s19 = int_to_ptr.vmem [resolvable:$true] %s18
      %24 = dma.hbm_to_vmem [thread:$0]  %s0, 256, %s19, [#allocation4], 128, 128, 8
    $region5: #{tpu_custom_call.1} parent=1 // pred_fallthru
      _
    // Predicated region
    $region6: #{tpu_custom_call.1} parent=1 // pred_check
      _
    $region7: #{tpu_custom_call.1} parent=1 // pred_check_branch
      %26 = sbr.rel (0) target = $region9
    $region8: #{tpu_custom_call.1} parent=1 // pred_region
      %s28 = ssub.s32 512, 512
      %29 = vsyncadd [#allocation7], %s28
      %s30 = sshll.u32 [#allocation6], 4
      %s31 = int_to_ptr.vmem [resolvable:$true] %s30
      %36 = dma.hbm_to_vmem [thread:$0]  %s1, 512, %s31, [#allocation7], 128, 128, 8
    $region9: #{tpu_custom_call.1} parent=1 // pred_fallthru
      _
    // Predicated region
    $region10: #{tpu_custom_call.1} parent=1 // pred_check
      _
    $region11: #{tpu_custom_call.1} parent=1 // pred_check_branch
      %38 = sbr.rel (0) target = $region13
    $region12: #{tpu_custom_call.1} parent=1 // pred_region
      _
    $region13: #{tpu_custom_call.1} parent=1 // pred_fallthru
      _
    // Predicated region
    $region14: #{tpu_custom_call.1} parent=1 // pred_check
      _
    $region15: #{tpu_custom_call.1} parent=1 // pred_check_branch
      %40 = sbr.rel (0) target = $region17
    $region16: #{tpu_custom_call.1} parent=1 // pred_region
      %s42 = ssub.s32 512, 512
      %43 = vsyncadd [#allocation7], %s42
      %s44 = sshll.u32 [#allocation8], 4
      %s45 = int_to_ptr.vmem [resolvable:$true] %s44
      %50 = dma.hbm_to_vmem [thread:$0]  %s3, 512, %s45, [#allocation7], 128, 128, 8
    $region17: #{tpu_custom_call.1} parent=1 // pred_fallthru
      _
    // Predicated region
    $region18: #{tpu_custom_call.1} parent=1 // pred_check
      _
    $region19: #{tpu_custom_call.1} parent=1 // pred_check_branch
      %52 = sbr.rel (0) target = $region21
    $region20: #{tpu_custom_call.1} parent=1 // pred_region
      _
    $region21: #{tpu_custom_call.1} parent=1 // pred_fallthru
      _
    // Predicated region
    $region22: #{tpu_custom_call.1} parent=1 // pred_check
      _
    $region23: #{tpu_custom_call.1} parent=1 // pred_check_branch
      %54 = sbr.rel (0) target = $region25
    $region24: #{tpu_custom_call.1} parent=1 // pred_region
      %55 = dma.done [#allocation4], 256
    $region25: #{tpu_custom_call.1} parent=1 // pred_fallthru
      _
    // Predicated region
    $region26: #{tpu_custom_call.1} parent=1 // pred_check
      _
    $region27: #{tpu_custom_call.1} parent=1 // pred_check_branch
      %57 = sbr.rel (0) target = $region29
    $region28: #{tpu_custom_call.1} parent=1 // pred_region
      %58 = dma.done [#allocation7], 512
    $region29: #{tpu_custom_call.1} parent=1 // pred_fallthru
      _
    // Predicated region
    $region30: #{tpu_custom_call.1} parent=1 // pred_check
      _
    $region31: #{tpu_custom_call.1} parent=1 // pred_check_branch
      %60 = sbr.rel (0) target = $region33
    $region32: #{tpu_custom_call.1} parent=1 // pred_region
      %61 = dma.done [#allocation7], 512
    $region33: #{tpu_custom_call.1} parent=1 // pred_fallthru
      _
    %v62 = vld [vmem:[#allocation3] sm:$0xff]
    %v63 = vld [vmem:[#allocation3 + $0x8] sm:$0xff]
    %v64 = vld [vmem:[#allocation6] sm:$0xff]
    %v65 = vld [vmem:[#allocation6 + $0x8] sm:$0xff]
    %v66 = vld [vmem:[#allocation6 + $0x10] sm:$0xff]
    %v67 = vld [vmem:[#allocation6 + $0x18] sm:$0xff]
    %v68 = vld [vmem:[%s2] sm:$0x1]
    %v70 = vlaneseq
    %v71 = vshrl.u32 %v70, 7
    %v72 = vsub.s32 0, %v71
    %v73 = vrot.slane %v68, %v72
    %vm75 = vcmask 261120
    %v77 = vsel %vm75, %v62, 0
    %v80 = vsel %vm75, %v63, 0
    %82 = vmatprep.subr.mxu0 0.0
    %83 = vmatpush1.msra.mxu0 0.0
    %84 = vmatprep.subr.mxu0 0.0
    %85 = vmatpush1.msra.mxu0 0.0
    %86 = vmatprep.subr.mxu0 0.0
    %87 = vmatpush1.msra.mxu0 0.0
    %88 = vmatprep.subr.mxu0 0.0
    %89 = vmatpush1.msra.mxu0 0.0
    %90 = vmatprep.subr.mxu0 0.0
    %91 = vmatpush1.msra.mxu0 0.0
    %92 = vmatprep.subr.mxu0 0.0
    %93 = vmatpush1.msra.mxu0 0.0
    %94 = vmatprep.subr.mxu0 0.0
    %95 = vmatpush1.msra.mxu0 0.0
    %96 = vmatprep.subr.mxu0 0.0
    %97 = vmatpush1.msra.mxu0 0.0
    %98 = vmatprep.subr.mxu0 0.0
    %99 = vmatpush1.msra.mxu0 0.0
    %100 = vmatprep.subr.mxu0 0.0
    %101 = vmatpush1.msra.mxu0 0.0
    %102 = vmatprep.subr.mxu0 0.0
    %103 = vmatpush1.msra.mxu0 0.0
    %104 = vmatprep.subr.mxu0 0.0
    %105 = vmatpush1.msra.mxu0 0.0
    %106 = vmatprep.subr.mxu0 0.0
    %107 = vmatpush1.msra.mxu0 %v67
    %108 = vmatprep.subr.mxu0 0.0
    %109 = vmatpush1.msra.mxu0 %v66
    %110 = vmatprep.subr.mxu0 0.0
    %111 = vmatpush1.msra.mxu0 %v65
    %112 = vmatprep.subr.mxu0 0.0
    %113 = vmatpush1.msra.mxu0 %v64
    %114 = vmatprep.subr.mxu0 0.0
    %115 = vmatpush2.msra.mxu0 0.0
    %116 = vmatprep.subr.mxu0 0.0
    %117 = vmatpush2.msra.mxu0 0.0
    %118 = vmatprep.subr.mxu0 0.0
    %119 = vmatpush2.msra.mxu0 0.0
    %120 = vmatprep.subr.mxu0 0.0
    %121 = vmatpush2.msra.mxu0 0.0
    %122 = vmatprep.subr.mxu0 0.0
    %123 = vmatpush2.msra.mxu0 0.0
    %124 = vmatprep.subr.mxu0 0.0
    %125 = vmatpush2.msra.mxu0 0.0
    %126 = vmatprep.subr.mxu0 0.0
    %127 = vmatpush2.msra.mxu0 0.0
    %128 = vmatprep.subr.mxu0 0.0
    %129 = vmatpush2.msra.mxu0 0.0
    %130 = vmatprep.subr.mxu0 0.0
    %131 = vmatpush2.msra.mxu0 0.0
    %132 = vmatprep.subr.mxu0 0.0
    %133 = vmatpush2.msra.mxu0 0.0
    %134 = vmatprep.subr.mxu0 0.0
    %135 = vmatpush2.msra.mxu0 0.0
    %136 = vmatprep.subr.mxu0 0.0
    %137 = vmatpush2.msra.mxu0 0.0
    %138 = vmatprep.subr.mxu0 0.0
    %139 = vmatpush2.msra.mxu0 0.0
    %140 = vmatprep.subr.mxu0 0.0
    %141 = vmatpush2.msra.mxu0 0.0
    %142 = vmatprep.subr.mxu0 0.0
    %143 = vmatpush2.msra.mxu0 0.0
    %144 = vmatprep.subr.mxu0 0.0
    %145 = vmatpush2.msra.mxu0 0.0
    %146 = vmatprep.mubr.f32.mxu0 0.0
    %147 = vmatmul.mubr.f32.gmra.mxu0 %v77
    %v148 = vpop.f32.mrf.mxu0
    %v149 = vadd.f32 %v73, %v148
    %v150 = vpop.f32.mrf.mxu0
    %151 = vmatprep.mubr.f32.mxu0 0.0
    %152 = vmatmul.mubr.f32.gmra.mxu0 %v80
    %v153 = vpop.f32.mrf.mxu0
    %v154 = vadd.f32 %v73, %v153
    %v155 = vpop.f32.mrf.mxu0
    %156 = vdwg.mxu0
    %v157 = vmul.f32 %v149, 0.35355338
    %v158 = vmul.f32 %v154, 0.35355338
    %160 = vrot.lane.b32.xlu0 %v149, 96
    %v161 = vpop.permute.xlu0 %160
    %vm162 = vcmask 64512
    %v164 = vsel %vm162, %v157, 0
    %v166 = vsel %vm162, %v161, 0
    %168 = vmatprep.subr.mxu0 0.0
    %169 = vmatpush1.xpose.msra.mxu0 0.0
    %170 = vmatprep.subr.mxu0 0.0
    %171 = vmatpush1.xpose.msra.mxu0 0.0
    %172 = vmatprep.subr.mxu0 0.0
    %173 = vmatpush1.xpose.msra.mxu0 0.0
    %174 = vmatprep.subr.mxu0 0.0
    %175 = vmatpush1.xpose.msra.mxu0 0.0
    %176 = vmatprep.subr.mxu0 0.0
    %177 = vmatpush1.xpose.msra.mxu0 0.0
    %178 = vmatprep.subr.mxu0 0.0
    %179 = vmatpush1.xpose.msra.mxu0 0.0
    %180 = vmatprep.subr.mxu0 0.0
    %181 = vmatpush1.xpose.msra.mxu0 0.0
    %182 = vmatprep.subr.mxu0 0.0
    %183 = vmatpush1.xpose.msra.mxu0 0.0
    %184 = vmatprep.subr.mxu0 0.0
    %185 = vmatpush1.xpose.msra.mxu0 0.0
    %186 = vmatprep.subr.mxu0 0.0
    %187 = vmatpush1.xpose.msra.mxu0 0.0
    %188 = vmatprep.subr.mxu0 0.0
    %189 = vmatpush1.xpose.msra.mxu0 0.0
    %190 = vmatprep.subr.mxu0 0.0
    %191 = vmatpush1.xpose.msra.mxu0 0.0
    %192 = vmatprep.subr.mxu0 0.0
    %193 = vmatpush1.xpose.msra.mxu0 0.0
    %194 = vmatprep.subr.mxu0 0.0
    %195 = vmatpush1.xpose.msra.mxu0 0.0
    %196 = vmatprep.subr.mxu0 0.0
    %197 = vmatpush1.xpose.msra.mxu0 0.0
    %198 = vmatprep.subr.mxu0 0.0
    %199 = vmatpush1.xpose.msra.mxu0 %v166
    %200 = vmatprep.subr.mxu0 0.0
    %201 = vmatpush2.xpose.msra.mxu0 0.0
    %202 = vmatprep.subr.mxu0 0.0
    %203 = vmatpush2.xpose.msra.mxu0 0.0
    %204 = vmatprep.subr.mxu0 0.0
    %205 = vmatpush2.xpose.msra.mxu0 0.0
    %206 = vmatprep.subr.mxu0 0.0
    %207 = vmatpush2.xpose.msra.mxu0 0.0
    %208 = vmatprep.subr.mxu0 0.0
    %209 = vmatpush2.xpose.msra.mxu0 0.0
    %210 = vmatprep.subr.mxu0 0.0
    %211 = vmatpush2.xpose.msra.mxu0 0.0
    %212 = vmatprep.subr.mxu0 0.0
    %213 = vmatpush2.xpose.msra.mxu0 0.0
    %214 = vmatprep.subr.mxu0 0.0
    %215 = vmatpush2.xpose.msra.mxu0 0.0
    %216 = vmatprep.subr.mxu0 0.0
    %217 = vmatpush2.xpose.msra.mxu0 0.0
    %218 = vmatprep.subr.mxu0 0.0
    %219 = vmatpush2.xpose.msra.mxu0 0.0
    %220 = vmatprep.subr.mxu0 0.0
    %221 = vmatpush2.xpose.msra.mxu0 0.0
    %222 = vmatprep.subr.mxu0 0.0
    %223 = vmatpush2.xpose.msra.mxu0 0.0
    %224 = vmatprep.subr.mxu0 0.0
    %225 = vmatpush2.xpose.msra.mxu0 0.0
    %226 = vmatprep.subr.mxu0 0.0
    %227 = vmatpush2.xpose.msra.mxu0 0.0
    %228 = vmatprep.subr.mxu0 0.0
    %229 = vmatpush2.xpose.msra.mxu0 0.0
    %230 = vmatprep.subr.mxu0 0.0
    %231 = vmatpush2.xpose.msra.mxu0 0.0
    %232 = vmatprep.mubr.f32.mxu0 0.0
    %233 = vmatmul.mubr.f32.gmra.mxu0 %v164
    %v234 = vpop.f32.mrf.mxu0
    %v235 = vadd.f32 0.0, %v234
    %v236 = vpop.f32.mrf.mxu0
    %237 = vdwg.mxu0
    %239 = vrot.lane.b32.xlu0 %v154, 96
    %v240 = vpop.permute.xlu0 %239
    %v242 = vsel %vm162, %v158, 0
    %v244 = vsel %vm162, %v240, 0
    %246 = vmatprep.subr.mxu0 0.0
    %247 = vmatpush1.xpose.msra.mxu0 0.0
    %248 = vmatprep.subr.mxu0 0.0
    %249 = vmatpush1.xpose.msra.mxu0 0.0
    %250 = vmatprep.subr.mxu0 0.0
    %251 = vmatpush1.xpose.msra.mxu0 0.0
    %252 = vmatprep.subr.mxu0 0.0
    %253 = vmatpush1.xpose.msra.mxu0 0.0
    %254 = vmatprep.subr.mxu0 0.0
    %255 = vmatpush1.xpose.msra.mxu0 0.0
    %256 = vmatprep.subr.mxu0 0.0
    %257 = vmatpush1.xpose.msra.mxu0 0.0
    %258 = vmatprep.subr.mxu0 0.0
    %259 = vmatpush1.xpose.msra.mxu0 0.0
    %260 = vmatprep.subr.mxu0 0.0
    %261 = vmatpush1.xpose.msra.mxu0 0.0
    %262 = vmatprep.subr.mxu0 0.0
    %263 = vmatpush1.xpose.msra.mxu0 0.0
    %264 = vmatprep.subr.mxu0 0.0
    %265 = vmatpush1.xpose.msra.mxu0 0.0
    %266 = vmatprep.subr.mxu0 0.0
    %267 = vmatpush1.xpose.msra.mxu0 0.0
    %268 = vmatprep.subr.mxu0 0.0
    %269 = vmatpush1.xpose.msra.mxu0 0.0
    %270 = vmatprep.subr.mxu0 0.0
    %271 = vmatpush1.xpose.msra.mxu0 0.0
    %272 = vmatprep.subr.mxu0 0.0
    %273 = vmatpush1.xpose.msra.mxu0 0.0
    %274 = vmatprep.subr.mxu0 0.0
    %275 = vmatpush1.xpose.msra.mxu0 0.0
    %276 = vmatprep.subr.mxu0 0.0
    %277 = vmatpush1.xpose.msra.mxu0 %v244
    %278 = vmatprep.subr.mxu0 0.0
    %279 = vmatpush2.xpose.msra.mxu0 0.0
    %280 = vmatprep.subr.mxu0 0.0
    %281 = vmatpush2.xpose.msra.mxu0 0.0
    %282 = vmatprep.subr.mxu0 0.0
    %283 = vmatpush2.xpose.msra.mxu0 0.0
    %284 = vmatprep.subr.mxu0 0.0
    %285 = vmatpush2.xpose.msra.mxu0 0.0
    %286 = vmatprep.subr.mxu0 0.0
    %287 = vmatpush2.xpose.msra.mxu0 0.0
    %288 = vmatprep.subr.mxu0 0.0
    %289 = vmatpush2.xpose.msra.mxu0 0.0
    %290 = vmatprep.subr.mxu0 0.0
    %291 = vmatpush2.xpose.msra.mxu0 0.0
    %292 = vmatprep.subr.mxu0 0.0
    %293 = vmatpush2.xpose.msra.mxu0 0.0
    %294 = vmatprep.subr.mxu0 0.0
    %295 = vmatpush2.xpose.msra.mxu0 0.0
    %296 = vmatprep.subr.mxu0 0.0
    %297 = vmatpush2.xpose.msra.mxu0 0.0
    %298 = vmatprep.subr.mxu0 0.0
    %299 = vmatpush2.xpose.msra.mxu0 0.0
    %300 = vmatprep.subr.mxu0 0.0
    %301 = vmatpush2.xpose.msra.mxu0 0.0
    %302 = vmatprep.subr.mxu0 0.0
    %303 = vmatpush2.xpose.msra.mxu0 0.0
    %304 = vmatprep.subr.mxu0 0.0
    %305 = vmatpush2.xpose.msra.mxu0 0.0
    %306 = vmatprep.subr.mxu0 0.0
    %307 = vmatpush2.xpose.msra.mxu0 0.0
    %308 = vmatprep.subr.mxu0 0.0
    %309 = vmatpush2.xpose.msra.mxu0 0.0
    %310 = vmatprep.mubr.f32.mxu0 0.0
    %311 = vmatmul.mubr.f32.gmra.mxu0 %v242
    %v312 = vpop.f32.mrf.mxu0
    %v313 = vadd.f32 0.0, %v312
    %v314 = vpop.f32.mrf.mxu0
    %315 = vdwg.mxu0
    %v316 = vsel %vm162, %v235, -inf
    %317 = vmax.xlane.f32.xlu0 %v316
    %v318 = vpop.xlane.xlu0 %317
    %v319 = vsel %vm162, %v313, -inf
    %320 = vmax.xlane.f32.xlu0 %v319
    %v321 = vpop.xlane.xlu0 %320
    %v322 = vsub.f32 %v235, %v318
    %v323 = vsub.f32 %v313, %v321
    %v324 = vmul.f32 %v322, 1.442695
    %v325 = vpow.pop %v324
    %v326 = vmul.f32 %v323, 1.442695
    %v327 = vpow.pop %v326
    %v328 = vsel %vm162, %v325, 0.0
    %329 = vadd.xlane.f32.xlu0 %v328
    %v330 = vpop.xlane.xlu0 %329
    %v331 = vsel %vm162, %v327, 0.0
    %332 = vadd.xlane.f32.xlu0 %v331
    %v333 = vpop.xlane.xlu0 %332
    %v334 = vrcp.pop %v330
    %v335 = vrcp.pop %v333
    %v336 = vmul.f32 %v325, %v334
    %v337 = vmul.f32 %v327, %v335
    %338 = vrot.lane.b32.xlu0 %v149, 64
    %v339 = vpop.permute.xlu0 %338
    %v342 = vsel %vm162, %v336, 0
    %344 = vmatprep.subr.mxu0 0.0
    %345 = vmatpush1.msra.mxu0 0.0
    %346 = vmatprep.subr.mxu0 0.0
    %347 = vmatpush1.msra.mxu0 0.0
    %348 = vmatprep.subr.mxu0 0.0
    %349 = vmatpush1.msra.mxu0 0.0
    %350 = vmatprep.subr.mxu0 0.0
    %351 = vmatpush1.msra.mxu0 0.0
    %352 = vmatprep.subr.mxu0 0.0
    %353 = vmatpush1.msra.mxu0 0.0
    %354 = vmatprep.subr.mxu0 0.0
    %355 = vmatpush1.msra.mxu0 0.0
    %356 = vmatprep.subr.mxu0 0.0
    %357 = vmatpush1.msra.mxu0 0.0
    %358 = vmatprep.subr.mxu0 0.0
    %359 = vmatpush1.msra.mxu0 0.0
    %360 = vmatprep.subr.mxu0 0.0
    %361 = vmatpush1.msra.mxu0 0.0
    %362 = vmatprep.subr.mxu0 0.0
    %363 = vmatpush1.msra.mxu0 0.0
    %364 = vmatprep.subr.mxu0 0.0
    %365 = vmatpush1.msra.mxu0 0.0
    %366 = vmatprep.subr.mxu0 0.0
    %367 = vmatpush1.msra.mxu0 0.0
    %368 = vmatprep.subr.mxu0 0.0
    %369 = vmatpush1.msra.mxu0 0.0
    %370 = vmatprep.subr.mxu0 0.0
    %371 = vmatpush1.msra.mxu0 0.0
    %372 = vmatprep.subr.mxu0 0.0
    %373 = vmatpush1.msra.mxu0 0.0
    %374 = vmatprep.subr.mxu0 0.0
    %375 = vmatpush1.msra.mxu0 %v339
    %376 = vmatprep.subr.mxu0 0.0
    %377 = vmatpush2.msra.mxu0 0.0
    %378 = vmatprep.subr.mxu0 0.0
    %379 = vmatpush2.msra.mxu0 0.0
    %380 = vmatprep.subr.mxu0 0.0
    %381 = vmatpush2.msra.mxu0 0.0
    %382 = vmatprep.subr.mxu0 0.0
    %383 = vmatpush2.msra.mxu0 0.0
    %384 = vmatprep.subr.mxu0 0.0
    %385 = vmatpush2.msra.mxu0 0.0
    %386 = vmatprep.subr.mxu0 0.0
    %387 = vmatpush2.msra.mxu0 0.0
    %388 = vmatprep.subr.mxu0 0.0
    %389 = vmatpush2.msra.mxu0 0.0
    %390 = vmatprep.subr.mxu0 0.0
    %391 = vmatpush2.msra.mxu0 0.0
    %392 = vmatprep.subr.mxu0 0.0
    %393 = vmatpush2.msra.mxu0 0.0
    %394 = vmatprep.subr.mxu0 0.0
    %395 = vmatpush2.msra.mxu0 0.0
    %396 = vmatprep.subr.mxu0 0.0
    %397 = vmatpush2.msra.mxu0 0.0
    %398 = vmatprep.subr.mxu0 0.0
    %399 = vmatpush2.msra.mxu0 0.0
    %400 = vmatprep.subr.mxu0 0.0
    %401 = vmatpush2.msra.mxu0 0.0
    %402 = vmatprep.subr.mxu0 0.0
    %403 = vmatpush2.msra.mxu0 0.0
    %404 = vmatprep.subr.mxu0 0.0
    %405 = vmatpush2.msra.mxu0 0.0
    %406 = vmatprep.subr.mxu0 0.0
    %407 = vmatpush2.msra.mxu0 0.0
    %408 = vmatprep.mubr.f32.mxu0 0.0
    %409 = vmatmul.mubr.f32.gmra.mxu0 %v342
    %v410 = vpop.f32.mrf.mxu0
    %v411 = vadd.f32 0.0, %v410
    %v412 = vpop.f32.mrf.mxu0
    %413 = vdwg.mxu0
    %414 = vrot.lane.b32.xlu0 %v154, 64
    %v415 = vpop.permute.xlu0 %414
    %v418 = vsel %vm162, %v337, 0
    %420 = vmatprep.subr.mxu0 0.0
    %421 = vmatpush1.msra.mxu0 0.0
    %422 = vmatprep.subr.mxu0 0.0
    %423 = vmatpush1.msra.mxu0 0.0
    %424 = vmatprep.subr.mxu0 0.0
    %425 = vmatpush1.msra.mxu0 0.0
    %426 = vmatprep.subr.mxu0 0.0
    %427 = vmatpush1.msra.mxu0 0.0
    %428 = vmatprep.subr.mxu0 0.0
    %429 = vmatpush1.msra.mxu0 0.0
    %430 = vmatprep.subr.mxu0 0.0
    %431 = vmatpush1.msra.mxu0 0.0
    %432 = vmatprep.subr.mxu0 0.0
    %433 = vmatpush1.msra.mxu0 0.0
    %434 = vmatprep.subr.mxu0 0.0
    %435 = vmatpush1.msra.mxu0 0.0
    %436 = vmatprep.subr.mxu0 0.0
    %437 = vmatpush1.msra.mxu0 0.0
    %438 = vmatprep.subr.mxu0 0.0
    %439 = vmatpush1.msra.mxu0 0.0
    %440 = vmatprep.subr.mxu0 0.0
    %441 = vmatpush1.msra.mxu0 0.0
    %442 = vmatprep.subr.mxu0 0.0
    %443 = vmatpush1.msra.mxu0 0.0
    %444 = vmatprep.subr.mxu0 0.0
    %445 = vmatpush1.msra.mxu0 0.0
    %446 = vmatprep.subr.mxu0 0.0
    %447 = vmatpush1.msra.mxu0 0.0
    %448 = vmatprep.subr.mxu0 0.0
    %449 = vmatpush1.msra.mxu0 0.0
    %450 = vmatprep.subr.mxu0 0.0
    %451 = vmatpush1.msra.mxu0 %v415
    %452 = vmatprep.subr.mxu0 0.0
    %453 = vmatpush2.msra.mxu0 0.0
    %454 = vmatprep.subr.mxu0 0.0
    %455 = vmatpush2.msra.mxu0 0.0
    %456 = vmatprep.subr.mxu0 0.0
    %457 = vmatpush2.msra.mxu0 0.0
    %458 = vmatprep.subr.mxu0 0.0
    %459 = vmatpush2.msra.mxu0 0.0
    %460 = vmatprep.subr.mxu0 0.0
    %461 = vmatpush2.msra.mxu0 0.0
    %462 = vmatprep.subr.mxu0 0.0
    %463 = vmatpush2.msra.mxu0 0.0
    %464 = vmatprep.subr.mxu0 0.0
    %465 = vmatpush2.msra.mxu0 0.0
    %466 = vmatprep.subr.mxu0 0.0
    %467 = vmatpush2.msra.mxu0 0.0
    %468 = vmatprep.subr.mxu0 0.0
    %469 = vmatpush2.msra.mxu0 0.0
    %470 = vmatprep.subr.mxu0 0.0
    %471 = vmatpush2.msra.mxu0 0.0
    %472 = vmatprep.subr.mxu0 0.0
    %473 = vmatpush2.msra.mxu0 0.0
    %474 = vmatprep.subr.mxu0 0.0
    %475 = vmatpush2.msra.mxu0 0.0
    %476 = vmatprep.subr.mxu0 0.0
    %477 = vmatpush2.msra.mxu0 0.0
    %478 = vmatprep.subr.mxu0 0.0
    %479 = vmatpush2.msra.mxu0 0.0
    %480 = vmatprep.subr.mxu0 0.0
    %481 = vmatpush2.msra.mxu0 0.0
    %482 = vmatprep.subr.mxu0 0.0
    %483 = vmatpush2.msra.mxu0 0.0
    %484 = vmatprep.mubr.f32.mxu0 0.0
    %485 = vmatmul.mubr.f32.gmra.mxu0 %v418
    %v486 = vpop.f32.mrf.mxu0
    %v487 = vadd.f32 0.0, %v486
    %v488 = vpop.f32.mrf.mxu0
    %489 = vdwg.mxu0
    %490 = vst.msk [vmem:[#allocation2] sm:$0xff] %vm162, %v411
    %491 = vst.msk [vmem:[#allocation2 + $0x8] sm:$0xff] %vm162, %v487
    %492 = vrot.lane.b32.xlu0 %v157, 120
    %v493 = vpop.permute.xlu0 %492
    %494 = vrot.lane.b32.xlu0 %v149, 88
    %v495 = vpop.permute.xlu0 %494
    %v496 = vsel %vm162, %v493, 0
    %v498 = vsel %vm162, %v495, 0
    %500 = vmatprep.subr.mxu0 0.0
    %501 = vmatpush1.xpose.msra.mxu0 0.0
    %502 = vmatprep.subr.mxu0 0.0
    %503 = vmatpush1.xpose.msra.mxu0 0.0
    %504 = vmatprep.subr.mxu0 0.0
    %505 = vmatpush1.xpose.msra.mxu0 0.0
    %506 = vmatprep.subr.mxu0 0.0
    %507 = vmatpush1.xpose.msra.mxu0 0.0
    %508 = vmatprep.subr.mxu0 0.0
    %509 = vmatpush1.xpose.msra.mxu0 0.0
    %510 = vmatprep.subr.mxu0 0.0
    %511 = vmatpush1.xpose.msra.mxu0 0.0
    %512 = vmatprep.subr.mxu0 0.0
    %513 = vmatpush1.xpose.msra.mxu0 0.0
    %514 = vmatprep.subr.mxu0 0.0
    %515 = vmatpush1.xpose.msra.mxu0 0.0
    %516 = vmatprep.subr.mxu0 0.0
    %517 = vmatpush1.xpose.msra.mxu0 0.0
    %518 = vmatprep.subr.mxu0 0.0
    %519 = vmatpush1.xpose.msra.mxu0 0.0
    %520 = vmatprep.subr.mxu0 0.0
    %521 = vmatpush1.xpose.msra.mxu0 0.0
    %522 = vmatprep.subr.mxu0 0.0
    %523 = vmatpush1.xpose.msra.mxu0 0.0
    %524 = vmatprep.subr.mxu0 0.0
    %525 = vmatpush1.xpose.msra.mxu0 0.0
    %526 = vmatprep.subr.mxu0 0.0
    %527 = vmatpush1.xpose.msra.mxu0 0.0
    %528 = vmatprep.subr.mxu0 0.0
    %529 = vmatpush1.xpose.msra.mxu0 0.0
    %530 = vmatprep.subr.mxu0 0.0
    %531 = vmatpush1.xpose.msra.mxu0 %v498
    %532 = vmatprep.subr.mxu0 0.0
    %533 = vmatpush2.xpose.msra.mxu0 0.0
    %534 = vmatprep.subr.mxu0 0.0
    %535 = vmatpush2.xpose.msra.mxu0 0.0
    %536 = vmatprep.subr.mxu0 0.0
    %537 = vmatpush2.xpose.msra.mxu0 0.0
    %538 = vmatprep.subr.mxu0 0.0
    %539 = vmatpush2.xpose.msra.mxu0 0.0
    %540 = vmatprep.subr.mxu0 0.0
    %541 = vmatpush2.xpose.msra.mxu0 0.0
    %542 = vmatprep.subr.mxu0 0.0
    %543 = vmatpush2.xpose.msra.mxu0 0.0
    %544 = vmatprep.subr.mxu0 0.0
    %545 = vmatpush2.xpose.msra.mxu0 0.0
    %546 = vmatprep.subr.mxu0 0.0
    %547 = vmatpush2.xpose.msra.mxu0 0.0
    %548 = vmatprep.subr.mxu0 0.0
    %549 = vmatpush2.xpose.msra.mxu0 0.0
    %550 = vmatprep.subr.mxu0 0.0
    %551 = vmatpush2.xpose.msra.mxu0 0.0
    %552 = vmatprep.subr.mxu0 0.0
    %553 = vmatpush2.xpose.msra.mxu0 0.0
    %554 = vmatprep.subr.mxu0 0.0
    %555 = vmatpush2.xpose.msra.mxu0 0.0
    %556 = vmatprep.subr.mxu0 0.0
    %557 = vmatpush2.xpose.msra.mxu0 0.0
    %558 = vmatprep.subr.mxu0 0.0
    %559 = vmatpush2.xpose.msra.mxu0 0.0
    %560 = vmatprep.subr.mxu0 0.0
    %561 = vmatpush2.xpose.msra.mxu0 0.0
    %562 = vmatprep.subr.mxu0 0.0
    %563 = vmatpush2.xpose.msra.mxu0 0.0
    %564 = vmatprep.mubr.f32.mxu0 0.0
    %565 = vmatmul.mubr.f32.gmra.mxu0 %v496
    %v566 = vpop.f32.mrf.mxu0
    %v567 = vadd.f32 0.0, %v566
    %v568 = vpop.f32.mrf.mxu0
    %569 = vdwg.mxu0
    %570 = vrot.lane.b32.xlu0 %v158, 120
    %v571 = vpop.permute.xlu0 %570
    %572 = vrot.lane.b32.xlu0 %v154, 88
    %v573 = vpop.permute.xlu0 %572
    %v574 = vsel %vm162, %v571, 0
    %v576 = vsel %vm162, %v573, 0
    %578 = vmatprep.subr.mxu0 0.0
    %579 = vmatpush1.xpose.msra.mxu0 0.0
    %580 = vmatprep.subr.mxu0 0.0
    %581 = vmatpush1.xpose.msra.mxu0 0.0
    %582 = vmatprep.subr.mxu0 0.0
    %583 = vmatpush1.xpose.msra.mxu0 0.0
    %584 = vmatprep.subr.mxu0 0.0
    %585 = vmatpush1.xpose.msra.mxu0 0.0
    %586 = vmatprep.subr.mxu0 0.0
    %587 = vmatpush1.xpose.msra.mxu0 0.0
    %588 = vmatprep.subr.mxu0 0.0
    %589 = vmatpush1.xpose.msra.mxu0 0.0
    %590 = vmatprep.subr.mxu0 0.0
    %591 = vmatpush1.xpose.msra.mxu0 0.0
    %592 = vmatprep.subr.mxu0 0.0
    %593 = vmatpush1.xpose.msra.mxu0 0.0
    %594 = vmatprep.subr.mxu0 0.0
    %595 = vmatpush1.xpose.msra.mxu0 0.0
    %596 = vmatprep.subr.mxu0 0.0
    %597 = vmatpush1.xpose.msra.mxu0 0.0
    %598 = vmatprep.subr.mxu0 0.0
    %599 = vmatpush1.xpose.msra.mxu0 0.0
    %600 = vmatprep.subr.mxu0 0.0
    %601 = vmatpush1.xpose.msra.mxu0 0.0
    %602 = vmatprep.subr.mxu0 0.0
    %603 = vmatpush1.xpose.msra.mxu0 0.0
    %604 = vmatprep.subr.mxu0 0.0
    %605 = vmatpush1.xpose.msra.mxu0 0.0
    %606 = vmatprep.subr.mxu0 0.0
    %607 = vmatpush1.xpose.msra.mxu0 0.0
    %608 = vmatprep.subr.mxu0 0.0
    %609 = vmatpush1.xpose.msra.mxu0 %v576
    %610 = vmatprep.subr.mxu0 0.0
    %611 = vmatpush2.xpose.msra.mxu0 0.0
    %612 = vmatprep.subr.mxu0 0.0
    %613 = vmatpush2.xpose.msra.mxu0 0.0
    %614 = vmatprep.subr.mxu0 0.0
    %615 = vmatpush2.xpose.msra.mxu0 0.0
    %616 = vmatprep.subr.mxu0 0.0
    %617 = vmatpush2.xpose.msra.mxu0 0.0
    %618 = vmatprep.subr.mxu0 0.0
    %619 = vmatpush2.xpose.msra.mxu0 0.0
    %620 = vmatprep.subr.mxu0 0.0
    %621 = vmatpush2.xpose.msra.mxu0 0.0
    %622 = vmatprep.subr.mxu0 0.0
    %623 = vmatpush2.xpose.msra.mxu0 0.0
    %624 = vmatprep.subr.mxu0 0.0
    %625 = vmatpush2.xpose.msra.mxu0 0.0
    %626 = vmatprep.subr.mxu0 0.0
    %627 = vmatpush2.xpose.msra.mxu0 0.0
    %628 = vmatprep.subr.mxu0 0.0
    %629 = vmatpush2.xpose.msra.mxu0 0.0
    %630 = vmatprep.subr.mxu0 0.0
    %631 = vmatpush2.xpose.msra.mxu0 0.0
    %632 = vmatprep.subr.mxu0 0.0
    %633 = vmatpush2.xpose.msra.mxu0 0.0
    %634 = vmatprep.subr.mxu0 0.0
    %635 = vmatpush2.xpose.msra.mxu0 0.0
    %636 = vmatprep.subr.mxu0 0.0
    %637 = vmatpush2.xpose.msra.mxu0 0.0
    %638 = vmatprep.subr.mxu0 0.0
    %639 = vmatpush2.xpose.msra.mxu0 0.0
    %640 = vmatprep.subr.mxu0 0.0
    %641 = vmatpush2.xpose.msra.mxu0 0.0
    %642 = vmatprep.mubr.f32.mxu0 0.0
    %643 = vmatmul.mubr.f32.gmra.mxu0 %v574
    %v644 = vpop.f32.mrf.mxu0
    %v645 = vadd.f32 0.0, %v644
    %v646 = vpop.f32.mrf.mxu0
    %647 = vdwg.mxu0
    %v648 = vsel %vm162, %v567, -inf
    %649 = vmax.xlane.f32.xlu0 %v648
    %v650 = vpop.xlane.xlu0 %649
    %v651 = vsel %vm162, %v645, -inf
    %652 = vmax.xlane.f32.xlu0 %v651
    %v653 = vpop.xlane.xlu0 %652
    %v654 = vsub.f32 %v567, %v650
    %v655 = vsub.f32 %v645, %v653
    %v656 = vmul.f32 %v654, 1.442695
    %v657 = vpow.pop %v656
    %v658 = vmul.f32 %v655, 1.442695
    %v659 = vpow.pop %v658
    %v660 = vsel %vm162, %v657, 0.0
    %661 = vadd.xlane.f32.xlu0 %v660
    %v662 = vpop.xlane.xlu0 %661
    %v663 = vsel %vm162, %v659, 0.0
    %664 = vadd.xlane.f32.xlu0 %v663
    %v665 = vpop.xlane.xlu0 %664
    %v666 = vrcp.pop %v662
    %v667 = vrcp.pop %v665
    %v668 = vmul.f32 %v657, %v666
    %v669 = vmul.f32 %v659, %v667
    %670 = vrot.lane.b32.xlu0 %v149, 56
    %v671 = vpop.permute.xlu0 %670
    %v674 = vsel %vm162, %v668, 0
    %676 = vmatprep.subr.mxu0 0.0
    %677 = vmatpush1.msra.mxu0 0.0
    %678 = vmatprep.subr.mxu0 0.0
    %679 = vmatpush1.msra.mxu0 0.0
    %680 = vmatprep.subr.mxu0 0.0
    %681 = vmatpush1.msra.mxu0 0.0
    %682 = vmatprep.subr.mxu0 0.0
    %683 = vmatpush1.msra.mxu0 0.0
    %684 = vmatprep.subr.mxu0 0.0
    %685 = vmatpush1.msra.mxu0 0.0
    %686 = vmatprep.subr.mxu0 0.0
    %687 = vmatpush1.msra.mxu0 0.0
    %688 = vmatprep.subr.mxu0 0.0
    %689 = vmatpush1.msra.mxu0 0.0
    %690 = vmatprep.subr.mxu0 0.0
    %691 = vmatpush1.msra.mxu0 0.0
    %692 = vmatprep.subr.mxu0 0.0
    %693 = vmatpush1.msra.mxu0 0.0
    %694 = vmatprep.subr.mxu0 0.0
    %695 = vmatpush1.msra.mxu0 0.0
    %696 = vmatprep.subr.mxu0 0.0
    %697 = vmatpush1.msra.mxu0 0.0
    %698 = vmatprep.subr.mxu0 0.0
    %699 = vmatpush1.msra.mxu0 0.0
    %700 = vmatprep.subr.mxu0 0.0
    %701 = vmatpush1.msra.mxu0 0.0
    %702 = vmatprep.subr.mxu0 0.0
    %703 = vmatpush1.msra.mxu0 0.0
    %704 = vmatprep.subr.mxu0 0.0
    %705 = vmatpush1.msra.mxu0 0.0
    %706 = vmatprep.subr.mxu0 0.0
    %707 = vmatpush1.msra.mxu0 %v671
    %708 = vmatprep.subr.mxu0 0.0
    %709 = vmatpush2.msra.mxu0 0.0
    %710 = vmatprep.subr.mxu0 0.0
    %711 = vmatpush2.msra.mxu0 0.0
    %712 = vmatprep.subr.mxu0 0.0
    %713 = vmatpush2.msra.mxu0 0.0
    %714 = vmatprep.subr.mxu0 0.0
    %715 = vmatpush2.msra.mxu0 0.0
    %716 = vmatprep.subr.mxu0 0.0
    %717 = vmatpush2.msra.mxu0 0.0
    %718 = vmatprep.subr.mxu0 0.0
    %719 = vmatpush2.msra.mxu0 0.0
    %720 = vmatprep.subr.mxu0 0.0
    %721 = vmatpush2.msra.mxu0 0.0
    %722 = vmatprep.subr.mxu0 0.0
    %723 = vmatpush2.msra.mxu0 0.0
    %724 = vmatprep.subr.mxu0 0.0
    %725 = vmatpush2.msra.mxu0 0.0
    %726 = vmatprep.subr.mxu0 0.0
    %727 = vmatpush2.msra.mxu0 0.0
    %728 = vmatprep.subr.mxu0 0.0
    %729 = vmatpush2.msra.mxu0 0.0
    %730 = vmatprep.subr.mxu0 0.0
    %731 = vmatpush2.msra.mxu0 0.0
    %732 = vmatprep.subr.mxu0 0.0
    %733 = vmatpush2.msra.mxu0 0.0
    %734 = vmatprep.subr.mxu0 0.0
    %735 = vmatpush2.msra.mxu0 0.0
    %736 = vmatprep.subr.mxu0 0.0
    %737 = vmatpush2.msra.mxu0 0.0
    %738 = vmatprep.subr.mxu0 0.0
    %739 = vmatpush2.msra.mxu0 0.0
    %740 = vmatprep.mubr.f32.mxu0 0.0
    %741 = vmatmul.mubr.f32.gmra.mxu0 %v674
    %v742 = vpop.f32.mrf.mxu0
    %v743 = vadd.f32 0.0, %v742
    %v744 = vpop.f32.mrf.mxu0
    %745 = vdwg.mxu0
    %746 = vrot.lane.b32.xlu0 %v154, 56
    %v747 = vpop.permute.xlu0 %746
    %v750 = vsel %vm162, %v669, 0
    %752 = vmatprep.subr.mxu0 0.0
    %753 = vmatpush1.msra.mxu0 0.0
    %754 = vmatprep.subr.mxu0 0.0
    %755 = vmatpush1.msra.mxu0 0.0
    %756 = vmatprep.subr.mxu0 0.0
    %757 = vmatpush1.msra.mxu0 0.0
    %758 = vmatprep.subr.mxu0 0.0
    %759 = vmatpush1.msra.mxu0 0.0
    %760 = vmatprep.subr.mxu0 0.0
    %761 = vmatpush1.msra.mxu0 0.0
    %762 = vmatprep.subr.mxu0 0.0
    %763 = vmatpush1.msra.mxu0 0.0
    %764 = vmatprep.subr.mxu0 0.0
    %765 = vmatpush1.msra.mxu0 0.0
    %766 = vmatprep.subr.mxu0 0.0
    %767 = vmatpush1.msra.mxu0 0.0
    %768 = vmatprep.subr.mxu0 0.0
    %769 = vmatpush1.msra.mxu0 0.0
    %770 = vmatprep.subr.mxu0 0.0
    %771 = vmatpush1.msra.mxu0 0.0
    %772 = vmatprep.subr.mxu0 0.0
    %773 = vmatpush1.msra.mxu0 0.0
    %774 = vmatprep.subr.mxu0 0.0
    %775 = vmatpush1.msra.mxu0 0.0
    %776 = vmatprep.subr.mxu0 0.0
    %777 = vmatpush1.msra.mxu0 0.0
    %778 = vmatprep.subr.mxu0 0.0
    %779 = vmatpush1.msra.mxu0 0.0
    %780 = vmatprep.subr.mxu0 0.0
    %781 = vmatpush1.msra.mxu0 0.0
    %782 = vmatprep.subr.mxu0 0.0
    %783 = vmatpush1.msra.mxu0 %v747
    %784 = vmatprep.subr.mxu0 0.0
    %785 = vmatpush2.msra.mxu0 0.0
    %786 = vmatprep.subr.mxu0 0.0
    %787 = vmatpush2.msra.mxu0 0.0
    %788 = vmatprep.subr.mxu0 0.0
    %789 = vmatpush2.msra.mxu0 0.0
    %790 = vmatprep.subr.mxu0 0.0
    %791 = vmatpush2.msra.mxu0 0.0
    %792 = vmatprep.subr.mxu0 0.0
    %793 = vmatpush2.msra.mxu0 0.0
    %794 = vmatprep.subr.mxu0 0.0
    %795 = vmatpush2.msra.mxu0 0.0
    %796 = vmatprep.subr.mxu0 0.0
    %797 = vmatpush2.msra.mxu0 0.0
    %798 = vmatprep.subr.mxu0 0.0
    %799 = vmatpush2.msra.mxu0 0.0
    %800 = vmatprep.subr.mxu0 0.0
    %801 = vmatpush2.msra.mxu0 0.0
    %802 = vmatprep.subr.mxu0 0.0
    %803 = vmatpush2.msra.mxu0 0.0
    %804 = vmatprep.subr.mxu0 0.0
    %805 = vmatpush2.msra.mxu0 0.0
    %806 = vmatprep.subr.mxu0 0.0
    %807 = vmatpush2.msra.mxu0 0.0
    %808 = vmatprep.subr.mxu0 0.0
    %809 = vmatpush2.msra.mxu0 0.0
    %810 = vmatprep.subr.mxu0 0.0
    %811 = vmatpush2.msra.mxu0 0.0
    %812 = vmatprep.subr.mxu0 0.0
    %813 = vmatpush2.msra.mxu0 0.0
    %814 = vmatprep.subr.mxu0 0.0
    %815 = vmatpush2.msra.mxu0 0.0
    %816 = vmatprep.mubr.f32.mxu0 0.0
    %817 = vmatmul.mubr.f32.gmra.mxu0 %v750
    %v818 = vpop.f32.mrf.mxu0
    %v819 = vadd.f32 0.0, %v818
    %v820 = vpop.f32.mrf.mxu0
    %821 = vdwg.mxu0
    %824 = vrot.lane.b32.xlu0 %v743, 8
    %v825 = vpop.permute.xlu0 %824
    %826 = vrot.lane.b32.xlu0 %v819, 8
    %v827 = vpop.permute.xlu0 %826
    %vm830 = vcmask 130112
    %831 = vst.msk [vmem:[#allocation2] sm:$0xff] %vm830, %v825
    %832 = vst.msk [vmem:[#allocation2 + $0x8] sm:$0xff] %vm830, %v827
    %833 = vrot.lane.b32.xlu0 %v157, 112
    %v834 = vpop.permute.xlu0 %833
    %835 = vrot.lane.b32.xlu0 %v149, 80
    %v836 = vpop.permute.xlu0 %835
    %v837 = vsel %vm162, %v834, 0
    %v839 = vsel %vm162, %v836, 0
    %841 = vmatprep.subr.mxu0 0.0
    %842 = vmatpush1.xpose.msra.mxu0 0.0
    %843 = vmatprep.subr.mxu0 0.0
    %844 = vmatpush1.xpose.msra.mxu0 0.0
    %845 = vmatprep.subr.mxu0 0.0
    %846 = vmatpush1.xpose.msra.mxu0 0.0
    %847 = vmatprep.subr.mxu0 0.0
    %848 = vmatpush1.xpose.msra.mxu0 0.0
    %849 = vmatprep.subr.mxu0 0.0
    %850 = vmatpush1.xpose.msra.mxu0 0.0
    %851 = vmatprep.subr.mxu0 0.0
    %852 = vmatpush1.xpose.msra.mxu0 0.0
    %853 = vmatprep.subr.mxu0 0.0
    %854 = vmatpush1.xpose.msra.mxu0 0.0
    %855 = vmatprep.subr.mxu0 0.0
    %856 = vmatpush1.xpose.msra.mxu0 0.0
    %857 = vmatprep.subr.mxu0 0.0
    %858 = vmatpush1.xpose.msra.mxu0 0.0
    %859 = vmatprep.subr.mxu0 0.0
    %860 = vmatpush1.xpose.msra.mxu0 0.0
    %861 = vmatprep.subr.mxu0 0.0
    %862 = vmatpush1.xpose.msra.mxu0 0.0
    %863 = vmatprep.subr.mxu0 0.0
    %864 = vmatpush1.xpose.msra.mxu0 0.0
    %865 = vmatprep.subr.mxu0 0.0
    %866 = vmatpush1.xpose.msra.mxu0 0.0
    %867 = vmatprep.subr.mxu0 0.0
    %868 = vmatpush1.xpose.msra.mxu0 0.0
    %869 = vmatprep.subr.mxu0 0.0
    %870 = vmatpush1.xpose.msra.mxu0 0.0
    %871 = vmatprep.subr.mxu0 0.0
    %872 = vmatpush1.xpose.msra.mxu0 %v839
    %873 = vmatprep.subr.mxu0 0.0
    %874 = vmatpush2.xpose.msra.mxu0 0.0
    %875 = vmatprep.subr.mxu0 0.0
    %876 = vmatpush2.xpose.msra.mxu0 0.0
    %877 = vmatprep.subr.mxu0 0.0
    %878 = vmatpush2.xpose.msra.mxu0 0.0
    %879 = vmatprep.subr.mxu0 0.0
    %880 = vmatpush2.xpose.msra.mxu0 0.0
    %881 = vmatprep.subr.mxu0 0.0
    %882 = vmatpush2.xpose.msra.mxu0 0.0
    %883 = vmatprep.subr.mxu0 0.0
    %884 = vmatpush2.xpose.msra.mxu0 0.0
    %885 = vmatprep.subr.mxu0 0.0
    %886 = vmatpush2.xpose.msra.mxu0 0.0
    %887 = vmatprep.subr.mxu0 0.0
    %888 = vmatpush2.xpose.msra.mxu0 0.0
    %889 = vmatprep.subr.mxu0 0.0
    %890 = vmatpush2.xpose.msra.mxu0 0.0
    %891 = vmatprep.subr.mxu0 0.0
    %892 = vmatpush2.xpose.msra.mxu0 0.0
    %893 = vmatprep.subr.mxu0 0.0
    %894 = vmatpush2.xpose.msra.mxu0 0.0
    %895 = vmatprep.subr.mxu0 0.0
    %896 = vmatpush2.xpose.msra.mxu0 0.0
    %897 = vmatprep.subr.mxu0 0.0
    %898 = vmatpush2.xpose.msra.mxu0 0.0
    %899 = vmatprep.subr.mxu0 0.0
    %900 = vmatpush2.xpose.msra.mxu0 0.0
    %901 = vmatprep.subr.mxu0 0.0
    %902 = vmatpush2.xpose.msra.mxu0 0.0
    %903 = vmatprep.subr.mxu0 0.0
    %904 = vmatpush2.xpose.msra.mxu0 0.0
    %905 = vmatprep.mubr.f32.mxu0 0.0
    %906 = vmatmul.mubr.f32.gmra.mxu0 %v837
    %v907 = vpop.f32.mrf.mxu0
    %v908 = vadd.f32 0.0, %v907
    %v909 = vpop.f32.mrf.mxu0
    %910 = vdwg.mxu0
    %911 = vrot.lane.b32.xlu0 %v158, 112
    %v912 = vpop.permute.xlu0 %911
    %913 = vrot.lane.b32.xlu0 %v154, 80
    %v914 = vpop.permute.xlu0 %913
    %v915 = vsel %vm162, %v912, 0
    %v917 = vsel %vm162, %v914, 0
    %919 = vmatprep.subr.mxu0 0.0
    %920 = vmatpush1.xpose.msra.mxu0 0.0
    %921 = vmatprep.subr.mxu0 0.0
    %922 = vmatpush1.xpose.msra.mxu0 0.0
    %923 = vmatprep.subr.mxu0 0.0
    %924 = vmatpush1.xpose.msra.mxu0 0.0
    %925 = vmatprep.subr.mxu0 0.0
    %926 = vmatpush1.xpose.msra.mxu0 0.0
    %927 = vmatprep.subr.mxu0 0.0
    %928 = vmatpush1.xpose.msra.mxu0 0.0
    %929 = vmatprep.subr.mxu0 0.0
    %930 = vmatpush1.xpose.msra.mxu0 0.0
    %931 = vmatprep.subr.mxu0 0.0
    %932 = vmatpush1.xpose.msra.mxu0 0.0
    %933 = vmatprep.subr.mxu0 0.0
    %934 = vmatpush1.xpose.msra.mxu0 0.0
    %935 = vmatprep.subr.mxu0 0.0
    %936 = vmatpush1.xpose.msra.mxu0 0.0
    %937 = vmatprep.subr.mxu0 0.0
    %938 = vmatpush1.xpose.msra.mxu0 0.0
    %939 = vmatprep.subr.mxu0 0.0
    %940 = vmatpush1.xpose.msra.mxu0 0.0
    %941 = vmatprep.subr.mxu0 0.0
    %942 = vmatpush1.xpose.msra.mxu0 0.0
    %943 = vmatprep.subr.mxu0 0.0
    %944 = vmatpush1.xpose.msra.mxu0 0.0
    %945 = vmatprep.subr.mxu0 0.0
    %946 = vmatpush1.xpose.msra.mxu0 0.0
    %947 = vmatprep.subr.mxu0 0.0
    %948 = vmatpush1.xpose.msra.mxu0 0.0
    %949 = vmatprep.subr.mxu0 0.0
    %950 = vmatpush1.xpose.msra.mxu0 %v917
    %951 = vmatprep.subr.mxu0 0.0
    %952 = vmatpush2.xpose.msra.mxu0 0.0
    %953 = vmatprep.subr.mxu0 0.0
    %954 = vmatpush2.xpose.msra.mxu0 0.0
    %955 = vmatprep.subr.mxu0 0.0
    %956 = vmatpush2.xpose.msra.mxu0 0.0
    %957 = vmatprep.subr.mxu0 0.0
    %958 = vmatpush2.xpose.msra.mxu0 0.0
    %959 = vmatprep.subr.mxu0 0.0
    %960 = vmatpush2.xpose.msra.mxu0 0.0
    %961 = vmatprep.subr.mxu0 0.0
    %962 = vmatpush2.xpose.msra.mxu0 0.0
    %963 = vmatprep.subr.mxu0 0.0
    %964 = vmatpush2.xpose.msra.mxu0 0.0
    %965 = vmatprep.subr.mxu0 0.0
    %966 = vmatpush2.xpose.msra.mxu0 0.0
    %967 = vmatprep.subr.mxu0 0.0
    %968 = vmatpush2.xpose.msra.mxu0 0.0
    %969 = vmatprep.subr.mxu0 0.0
    %970 = vmatpush2.xpose.msra.mxu0 0.0
    %971 = vmatprep.subr.mxu0 0.0
    %972 = vmatpush2.xpose.msra.mxu0 0.0
    %973 = vmatprep.subr.mxu0 0.0
    %974 = vmatpush2.xpose.msra.mxu0 0.0
    %975 = vmatprep.subr.mxu0 0.0
    %976 = vmatpush2.xpose.msra.mxu0 0.0
    %977 = vmatprep.subr.mxu0 0.0
    %978 = vmatpush2.xpose.msra.mxu0 0.0
    %979 = vmatprep.subr.mxu0 0.0
    %980 = vmatpush2.xpose.msra.mxu0 0.0
    %981 = vmatprep.subr.mxu0 0.0
    %982 = vmatpush2.xpose.msra.mxu0 0.0
    %983 = vmatprep.mubr.f32.mxu0 0.0
    %984 = vmatmul.mubr.f32.gmra.mxu0 %v915
    %v985 = vpop.f32.mrf.mxu0
    %v986 = vadd.f32 0.0, %v985
    %v987 = vpop.f32.mrf.mxu0
    %988 = vdwg.mxu0
    %v989 = vsel %vm162, %v908, -inf
    %990 = vmax.xlane.f32.xlu0 %v989
    %v991 = vpop.xlane.xlu0 %990
    %v992 = vsel %vm162, %v986, -inf
    %993 = vmax.xlane.f32.xlu0 %v992
    %v994 = vpop.xlane.xlu0 %993
    %v995 = vsub.f32 %v908, %v991
    %v996 = vsub.f32 %v986, %v994
    %v997 = vmul.f32 %v995, 1.442695
    %v998 = vpow.pop %v997
    %v999 = vmul.f32 %v996, 1.442695
    %v1000 = vpow.pop %v999
    %v1001 = vsel %vm162, %v998, 0.0
    %1002 = vadd.xlane.f32.xlu0 %v1001
    %v1003 = vpop.xlane.xlu0 %1002
    %v1004 = vsel %vm162, %v1000, 0.0
    %1005 = vadd.xlane.f32.xlu0 %v1004
    %v1006 = vpop.xlane.xlu0 %1005
    %v1007 = vrcp.pop %v1003
    %v1008 = vrcp.pop %v1006
    %v1009 = vmul.f32 %v998, %v1007
    %v1010 = vmul.f32 %v1000, %v1008
    %1011 = vrot.lane.b32.xlu0 %v149, 48
    %v1012 = vpop.permute.xlu0 %1011
    %v1015 = vsel %vm162, %v1009, 0
    %1017 = vmatprep.subr.mxu0 0.0
    %1018 = vmatpush1.msra.mxu0 0.0
    %1019 = vmatprep.subr.mxu0 0.0
    %1020 = vmatpush1.msra.mxu0 0.0
    %1021 = vmatprep.subr.mxu0 0.0
    %1022 = vmatpush1.msra.mxu0 0.0
    %1023 = vmatprep.subr.mxu0 0.0
    %1024 = vmatpush1.msra.mxu0 0.0
    %1025 = vmatprep.subr.mxu0 0.0
    %1026 = vmatpush1.msra.mxu0 0.0
    %1027 = vmatprep.subr.mxu0 0.0
    %1028 = vmatpush1.msra.mxu0 0.0
    %1029 = vmatprep.subr.mxu0 0.0
    %1030 = vmatpush1.msra.mxu0 0.0
    %1031 = vmatprep.subr.mxu0 0.0
    %1032 = vmatpush1.msra.mxu0 0.0
    %1033 = vmatprep.subr.mxu0 0.0
    %1034 = vmatpush1.msra.mxu0 0.0
    %1035 = vmatprep.subr.mxu0 0.0
    %1036 = vmatpush1.msra.mxu0 0.0
    %1037 = vmatprep.subr.mxu0 0.0
    %1038 = vmatpush1.msra.mxu0 0.0
    %1039 = vmatprep.subr.mxu0 0.0
    %1040 = vmatpush1.msra.mxu0 0.0
    %1041 = vmatprep.subr.mxu0 0.0
    %1042 = vmatpush1.msra.mxu0 0.0
    %1043 = vmatprep.subr.mxu0 0.0
    %1044 = vmatpush1.msra.mxu0 0.0
    %1045 = vmatprep.subr.mxu0 0.0
    %1046 = vmatpush1.msra.mxu0 0.0
    %1047 = vmatprep.subr.mxu0 0.0
    %1048 = vmatpush1.msra.mxu0 %v1012
    %1049 = vmatprep.subr.mxu0 0.0
    %1050 = vmatpush2.msra.mxu0 0.0
    %1051 = vmatprep.subr.mxu0 0.0
    %1052 = vmatpush2.msra.mxu0 0.0
    %1053 = vmatprep.subr.mxu0 0.0
    %1054 = vmatpush2.msra.mxu0 0.0
    %1055 = vmatprep.subr.mxu0 0.0
    %1056 = vmatpush2.msra.mxu0 0.0
    %1057 = vmatprep.subr.mxu0 0.0
    %1058 = vmatpush2.msra.mxu0 0.0
    %1059 = vmatprep.subr.mxu0 0.0
    %1060 = vmatpush2.msra.mxu0 0.0
    %1061 = vmatprep.subr.mxu0 0.0
    %1062 = vmatpush2.msra.mxu0 0.0
    %1063 = vmatprep.subr.mxu0 0.0
    %1064 = vmatpush2.msra.mxu0 0.0
    %1065 = vmatprep.subr.mxu0 0.0
    %1066 = vmatpush2.msra.mxu0 0.0
    %1067 = vmatprep.subr.mxu0 0.0
    %1068 = vmatpush2.msra.mxu0 0.0
    %1069 = vmatprep.subr.mxu0 0.0
    %1070 = vmatpush2.msra.mxu0 0.0
    %1071 = vmatprep.subr.mxu0 0.0
    %1072 = vmatpush2.msra.mxu0 0.0
    %1073 = vmatprep.subr.mxu0 0.0
    %1074 = vmatpush2.msra.mxu0 0.0
    %1075 = vmatprep.subr.mxu0 0.0
    %1076 = vmatpush2.msra.mxu0 0.0
    %1077 = vmatprep.subr.mxu0 0.0
    %1078 = vmatpush2.msra.mxu0 0.0
    %1079 = vmatprep.subr.mxu0 0.0
    %1080 = vmatpush2.msra.mxu0 0.0
    %1081 = vmatprep.mubr.f32.mxu0 0.0
    %1082 = vmatmul.mubr.f32.gmra.mxu0 %v1015
    %v1083 = vpop.f32.mrf.mxu0
    %v1084 = vadd.f32 0.0, %v1083
    %v1085 = vpop.f32.mrf.mxu0
    %1086 = vdwg.mxu0
    %1087 = vrot.lane.b32.xlu0 %v154, 48
    %v1088 = vpop.permute.xlu0 %1087
    %v1091 = vsel %vm162, %v1010, 0
    %1093 = vmatprep.subr.mxu0 0.0
    %1094 = vmatpush1.msra.mxu0 0.0
    %1095 = vmatprep.subr.mxu0 0.0
    %1096 = vmatpush1.msra.mxu0 0.0
    %1097 = vmatprep.subr.mxu0 0.0
    %1098 = vmatpush1.msra.mxu0 0.0
    %1099 = vmatprep.subr.mxu0 0.0
    %1100 = vmatpush1.msra.mxu0 0.0
    %1101 = vmatprep.subr.mxu0 0.0
    %1102 = vmatpush1.msra.mxu0 0.0
    %1103 = vmatprep.subr.mxu0 0.0
    %1104 = vmatpush1.msra.mxu0 0.0
    %1105 = vmatprep.subr.mxu0 0.0
    %1106 = vmatpush1.msra.mxu0 0.0
    %1107 = vmatprep.subr.mxu0 0.0
    %1108 = vmatpush1.msra.mxu0 0.0
    %1109 = vmatprep.subr.mxu0 0.0
    %1110 = vmatpush1.msra.mxu0 0.0
    %1111 = vmatprep.subr.mxu0 0.0
    %1112 = vmatpush1.msra.mxu0 0.0
    %1113 = vmatprep.subr.mxu0 0.0
    %1114 = vmatpush1.msra.mxu0 0.0
    %1115 = vmatprep.subr.mxu0 0.0
    %1116 = vmatpush1.msra.mxu0 0.0
    %1117 = vmatprep.subr.mxu0 0.0
    %1118 = vmatpush1.msra.mxu0 0.0
    %1119 = vmatprep.subr.mxu0 0.0
    %1120 = vmatpush1.msra.mxu0 0.0
    %1121 = vmatprep.subr.mxu0 0.0
    %1122 = vmatpush1.msra.mxu0 0.0
    %1123 = vmatprep.subr.mxu0 0.0
    %1124 = vmatpush1.msra.mxu0 %v1088
    %1125 = vmatprep.subr.mxu0 0.0
    %1126 = vmatpush2.msra.mxu0 0.0
    %1127 = vmatprep.subr.mxu0 0.0
    %1128 = vmatpush2.msra.mxu0 0.0
    %1129 = vmatprep.subr.mxu0 0.0
    %1130 = vmatpush2.msra.mxu0 0.0
    %1131 = vmatprep.subr.mxu0 0.0
    %1132 = vmatpush2.msra.mxu0 0.0
    %1133 = vmatprep.subr.mxu0 0.0
    %1134 = vmatpush2.msra.mxu0 0.0
    %1135 = vmatprep.subr.mxu0 0.0
    %1136 = vmatpush2.msra.mxu0 0.0
    %1137 = vmatprep.subr.mxu0 0.0
    %1138 = vmatpush2.msra.mxu0 0.0
    %1139 = vmatprep.subr.mxu0 0.0
    %1140 = vmatpush2.msra.mxu0 0.0
    %1141 = vmatprep.subr.mxu0 0.0
    %1142 = vmatpush2.msra.mxu0 0.0
    %1143 = vmatprep.subr.mxu0 0.0
    %1144 = vmatpush2.msra.mxu0 0.0
    %1145 = vmatprep.subr.mxu0 0.0
    %1146 = vmatpush2.msra.mxu0 0.0
    %1147 = vmatprep.subr.mxu0 0.0
    %1148 = vmatpush2.msra.mxu0 0.0
    %1149 = vmatprep.subr.mxu0 0.0
    %1150 = vmatpush2.msra.mxu0 0.0
    %1151 = vmatprep.subr.mxu0 0.0
    %1152 = vmatpush2.msra.mxu0 0.0
    %1153 = vmatprep.subr.mxu0 0.0
    %1154 = vmatpush2.msra.mxu0 0.0
    %1155 = vmatprep.subr.mxu0 0.0
    %1156 = vmatpush2.msra.mxu0 0.0
    %1157 = vmatprep.mubr.f32.mxu0 0.0
    %1158 = vmatmul.mubr.f32.gmra.mxu0 %v1091
    %v1159 = vpop.f32.mrf.mxu0
    %v1160 = vadd.f32 0.0, %v1159
    %v1161 = vpop.f32.mrf.mxu0
    %1162 = vdwg.mxu0
    %1165 = vrot.lane.b32.xlu0 %v1084, 16
    %v1166 = vpop.permute.xlu0 %1165
    %1167 = vrot.lane.b32.xlu0 %v1160, 16
    %v1168 = vpop.permute.xlu0 %1167
    %vm1171 = vcmask 195712
    %1172 = vst.msk [vmem:[#allocation2] sm:$0xff] %vm1171, %v1166
    %1173 = vst.msk [vmem:[#allocation2 + $0x8] sm:$0xff] %vm1171, %v1168
    %1174 = vrot.lane.b32.xlu0 %v157, 104
    %v1175 = vpop.permute.xlu0 %1174
    %1176 = vrot.lane.b32.xlu0 %v149, 72
    %v1177 = vpop.permute.xlu0 %1176
    %v1178 = vsel %vm162, %v1175, 0
    %v1180 = vsel %vm162, %v1177, 0
    %1182 = vmatprep.subr.mxu0 0.0
    %1183 = vmatpush1.xpose.msra.mxu0 0.0
    %1184 = vmatprep.subr.mxu0 0.0
    %1185 = vmatpush1.xpose.msra.mxu0 0.0
    %1186 = vmatprep.subr.mxu0 0.0
    %1187 = vmatpush1.xpose.msra.mxu0 0.0
    %1188 = vmatprep.subr.mxu0 0.0
    %1189 = vmatpush1.xpose.msra.mxu0 0.0
    %1190 = vmatprep.subr.mxu0 0.0
    %1191 = vmatpush1.xpose.msra.mxu0 0.0
    %1192 = vmatprep.subr.mxu0 0.0
    %1193 = vmatpush1.xpose.msra.mxu0 0.0
    %1194 = vmatprep.subr.mxu0 0.0
    %1195 = vmatpush1.xpose.msra.mxu0 0.0
    %1196 = vmatprep.subr.mxu0 0.0
    %1197 = vmatpush1.xpose.msra.mxu0 0.0
    %1198 = vmatprep.subr.mxu0 0.0
    %1199 = vmatpush1.xpose.msra.mxu0 0.0
    %1200 = vmatprep.subr.mxu0 0.0
    %1201 = vmatpush1.xpose.msra.mxu0 0.0
    %1202 = vmatprep.subr.mxu0 0.0
    %1203 = vmatpush1.xpose.msra.mxu0 0.0
    %1204 = vmatprep.subr.mxu0 0.0
    %1205 = vmatpush1.xpose.msra.mxu0 0.0
    %1206 = vmatprep.subr.mxu0 0.0
    %1207 = vmatpush1.xpose.msra.mxu0 0.0
    %1208 = vmatprep.subr.mxu0 0.0
    %1209 = vmatpush1.xpose.msra.mxu0 0.0
    %1210 = vmatprep.subr.mxu0 0.0
    %1211 = vmatpush1.xpose.msra.mxu0 0.0
    %1212 = vmatprep.subr.mxu0 0.0
    %1213 = vmatpush1.xpose.msra.mxu0 %v1180
    %1214 = vmatprep.subr.mxu0 0.0
    %1215 = vmatpush2.xpose.msra.mxu0 0.0
    %1216 = vmatprep.subr.mxu0 0.0
    %1217 = vmatpush2.xpose.msra.mxu0 0.0
    %1218 = vmatprep.subr.mxu0 0.0
    %1219 = vmatpush2.xpose.msra.mxu0 0.0
    %1220 = vmatprep.subr.mxu0 0.0
    %1221 = vmatpush2.xpose.msra.mxu0 0.0
    %1222 = vmatprep.subr.mxu0 0.0
    %1223 = vmatpush2.xpose.msra.mxu0 0.0
    %1224 = vmatprep.subr.mxu0 0.0
    %1225 = vmatpush2.xpose.msra.mxu0 0.0
    %1226 = vmatprep.subr.mxu0 0.0
    %1227 = vmatpush2.xpose.msra.mxu0 0.0
    %1228 = vmatprep.subr.mxu0 0.0
    %1229 = vmatpush2.xpose.msra.mxu0 0.0
    %1230 = vmatprep.subr.mxu0 0.0
    %1231 = vmatpush2.xpose.msra.mxu0 0.0
    %1232 = vmatprep.subr.mxu0 0.0
    %1233 = vmatpush2.xpose.msra.mxu0 0.0
    %1234 = vmatprep.subr.mxu0 0.0
    %1235 = vmatpush2.xpose.msra.mxu0 0.0
    %1236 = vmatprep.subr.mxu0 0.0
    %1237 = vmatpush2.xpose.msra.mxu0 0.0
    %1238 = vmatprep.subr.mxu0 0.0
    %1239 = vmatpush2.xpose.msra.mxu0 0.0
    %1240 = vmatprep.subr.mxu0 0.0
    %1241 = vmatpush2.xpose.msra.mxu0 0.0
    %1242 = vmatprep.subr.mxu0 0.0
    %1243 = vmatpush2.xpose.msra.mxu0 0.0
    %1244 = vmatprep.subr.mxu0 0.0
    %1245 = vmatpush2.xpose.msra.mxu0 0.0
    %1246 = vmatprep.mubr.f32.mxu0 0.0
    %1247 = vmatmul.mubr.f32.gmra.mxu0 %v1178
    %v1248 = vpop.f32.mrf.mxu0
    %v1249 = vadd.f32 0.0, %v1248
    %v1250 = vpop.f32.mrf.mxu0
    %1251 = vdwg.mxu0
    %1252 = vrot.lane.b32.xlu0 %v158, 104
    %v1253 = vpop.permute.xlu0 %1252
    %1254 = vrot.lane.b32.xlu0 %v154, 72
    %v1255 = vpop.permute.xlu0 %1254
    %v1256 = vsel %vm162, %v1253, 0
    %v1258 = vsel %vm162, %v1255, 0
    %1260 = vmatprep.subr.mxu0 0.0
    %1261 = vmatpush1.xpose.msra.mxu0 0.0
    %1262 = vmatprep.subr.mxu0 0.0
    %1263 = vmatpush1.xpose.msra.mxu0 0.0
    %1264 = vmatprep.subr.mxu0 0.0
    %1265 = vmatpush1.xpose.msra.mxu0 0.0
    %1266 = vmatprep.subr.mxu0 0.0
    %1267 = vmatpush1.xpose.msra.mxu0 0.0
    %1268 = vmatprep.subr.mxu0 0.0
    %1269 = vmatpush1.xpose.msra.mxu0 0.0
    %1270 = vmatprep.subr.mxu0 0.0
    %1271 = vmatpush1.xpose.msra.mxu0 0.0
    %1272 = vmatprep.subr.mxu0 0.0
    %1273 = vmatpush1.xpose.msra.mxu0 0.0
    %1274 = vmatprep.subr.mxu0 0.0
    %1275 = vmatpush1.xpose.msra.mxu0 0.0
    %1276 = vmatprep.subr.mxu0 0.0
    %1277 = vmatpush1.xpose.msra.mxu0 0.0
    %1278 = vmatprep.subr.mxu0 0.0
    %1279 = vmatpush1.xpose.msra.mxu0 0.0
    %1280 = vmatprep.subr.mxu0 0.0
    %1281 = vmatpush1.xpose.msra.mxu0 0.0
    %1282 = vmatprep.subr.mxu0 0.0
    %1283 = vmatpush1.xpose.msra.mxu0 0.0
    %1284 = vmatprep.subr.mxu0 0.0
    %1285 = vmatpush1.xpose.msra.mxu0 0.0
    %1286 = vmatprep.subr.mxu0 0.0
    %1287 = vmatpush1.xpose.msra.mxu0 0.0
    %1288 = vmatprep.subr.mxu0 0.0
    %1289 = vmatpush1.xpose.msra.mxu0 0.0
    %1290 = vmatprep.subr.mxu0 0.0
    %1291 = vmatpush1.xpose.msra.mxu0 %v1258
    %1292 = vmatprep.subr.mxu0 0.0
    %1293 = vmatpush2.xpose.msra.mxu0 0.0
    %1294 = vmatprep.subr.mxu0 0.0
    %1295 = vmatpush2.xpose.msra.mxu0 0.0
    %1296 = vmatprep.subr.mxu0 0.0
    %1297 = vmatpush2.xpose.msra.mxu0 0.0
    %1298 = vmatprep.subr.mxu0 0.0
    %1299 = vmatpush2.xpose.msra.mxu0 0.0
    %1300 = vmatprep.subr.mxu0 0.0
    %1301 = vmatpush2.xpose.msra.mxu0 0.0
    %1302 = vmatprep.subr.mxu0 0.0
    %1303 = vmatpush2.xpose.msra.mxu0 0.0
    %1304 = vmatprep.subr.mxu0 0.0
    %1305 = vmatpush2.xpose.msra.mxu0 0.0
    %1306 = vmatprep.subr.mxu0 0.0
    %1307 = vmatpush2.xpose.msra.mxu0 0.0
    %1308 = vmatprep.subr.mxu0 0.0
    %1309 = vmatpush2.xpose.msra.mxu0 0.0
    %1310 = vmatprep.subr.mxu0 0.0
    %1311 = vmatpush2.xpose.msra.mxu0 0.0
    %1312 = vmatprep.subr.mxu0 0.0
    %1313 = vmatpush2.xpose.msra.mxu0 0.0
    %1314 = vmatprep.subr.mxu0 0.0
    %1315 = vmatpush2.xpose.msra.mxu0 0.0
    %1316 = vmatprep.subr.mxu0 0.0
    %1317 = vmatpush2.xpose.msra.mxu0 0.0
    %1318 = vmatprep.subr.mxu0 0.0
    %1319 = vmatpush2.xpose.msra.mxu0 0.0
    %1320 = vmatprep.subr.mxu0 0.0
    %1321 = vmatpush2.xpose.msra.mxu0 0.0
    %1322 = vmatprep.subr.mxu0 0.0
    %1323 = vmatpush2.xpose.msra.mxu0 0.0
    %1324 = vmatprep.mubr.f32.mxu0 0.0
    %1325 = vmatmul.mubr.f32.gmra.mxu0 %v1256
    %v1326 = vpop.f32.mrf.mxu0
    %v1327 = vadd.f32 0.0, %v1326
    %v1328 = vpop.f32.mrf.mxu0
    %1329 = vdwg.mxu0
    %v1330 = vsel %vm162, %v1249, -inf
    %1331 = vmax.xlane.f32.xlu0 %v1330
    %v1332 = vpop.xlane.xlu0 %1331
    %v1333 = vsel %vm162, %v1327, -inf
    %1334 = vmax.xlane.f32.xlu0 %v1333
    %v1335 = vpop.xlane.xlu0 %1334
    %v1336 = vsub.f32 %v1249, %v1332
    %v1337 = vsub.f32 %v1327, %v1335
    %v1338 = vmul.f32 %v1336, 1.442695
    %v1339 = vpow.pop %v1338
    %v1340 = vmul.f32 %v1337, 1.442695
    %v1341 = vpow.pop %v1340
    %v1342 = vsel %vm162, %v1339, 0.0
    %1343 = vadd.xlane.f32.xlu0 %v1342
    %v1344 = vpop.xlane.xlu0 %1343
    %v1345 = vsel %vm162, %v1341, 0.0
    %1346 = vadd.xlane.f32.xlu0 %v1345
    %v1347 = vpop.xlane.xlu0 %1346
    %v1348 = vrcp.pop %v1344
    %v1349 = vrcp.pop %v1347
    %v1350 = vmul.f32 %v1339, %v1348
    %v1351 = vmul.f32 %v1341, %v1349
    %1352 = vrot.lane.b32.xlu0 %v149, 40
    %v1353 = vpop.permute.xlu0 %1352
    %v1356 = vsel %vm162, %v1350, 0
    %1358 = vmatprep.subr.mxu0 0.0
    %1359 = vmatpush1.msra.mxu0 0.0
    %1360 = vmatprep.subr.mxu0 0.0
    %1361 = vmatpush1.msra.mxu0 0.0
    %1362 = vmatprep.subr.mxu0 0.0
    %1363 = vmatpush1.msra.mxu0 0.0
    %1364 = vmatprep.subr.mxu0 0.0
    %1365 = vmatpush1.msra.mxu0 0.0
    %1366 = vmatprep.subr.mxu0 0.0
    %1367 = vmatpush1.msra.mxu0 0.0
    %1368 = vmatprep.subr.mxu0 0.0
    %1369 = vmatpush1.msra.mxu0 0.0
    %1370 = vmatprep.subr.mxu0 0.0
    %1371 = vmatpush1.msra.mxu0 0.0
    %1372 = vmatprep.subr.mxu0 0.0
    %1373 = vmatpush1.msra.mxu0 0.0
    %1374 = vmatprep.subr.mxu0 0.0
    %1375 = vmatpush1.msra.mxu0 0.0
    %1376 = vmatprep.subr.mxu0 0.0
    %1377 = vmatpush1.msra.mxu0 0.0
    %1378 = vmatprep.subr.mxu0 0.0
    %1379 = vmatpush1.msra.mxu0 0.0
    %1380 = vmatprep.subr.mxu0 0.0
    %1381 = vmatpush1.msra.mxu0 0.0
    %1382 = vmatprep.subr.mxu0 0.0
    %1383 = vmatpush1.msra.mxu0 0.0
    %1384 = vmatprep.subr.mxu0 0.0
    %1385 = vmatpush1.msra.mxu0 0.0
    %1386 = vmatprep.subr.mxu0 0.0
    %1387 = vmatpush1.msra.mxu0 0.0
    %1388 = vmatprep.subr.mxu0 0.0
    %1389 = vmatpush1.msra.mxu0 %v1353
    %1390 = vmatprep.subr.mxu0 0.0
    %1391 = vmatpush2.msra.mxu0 0.0
    %1392 = vmatprep.subr.mxu0 0.0
    %1393 = vmatpush2.msra.mxu0 0.0
    %1394 = vmatprep.subr.mxu0 0.0
    %1395 = vmatpush2.msra.mxu0 0.0
    %1396 = vmatprep.subr.mxu0 0.0
    %1397 = vmatpush2.msra.mxu0 0.0
    %1398 = vmatprep.subr.mxu0 0.0
    %1399 = vmatpush2.msra.mxu0 0.0
    %1400 = vmatprep.subr.mxu0 0.0
    %1401 = vmatpush2.msra.mxu0 0.0
    %1402 = vmatprep.subr.mxu0 0.0
    %1403 = vmatpush2.msra.mxu0 0.0
    %1404 = vmatprep.subr.mxu0 0.0
    %1405 = vmatpush2.msra.mxu0 0.0
    %1406 = vmatprep.subr.mxu0 0.0
    %1407 = vmatpush2.msra.mxu0 0.0
    %1408 = vmatprep.subr.mxu0 0.0
    %1409 = vmatpush2.msra.mxu0 0.0
    %1410 = vmatprep.subr.mxu0 0.0
    %1411 = vmatpush2.msra.mxu0 0.0
    %1412 = vmatprep.subr.mxu0 0.0
    %1413 = vmatpush2.msra.mxu0 0.0
    %1414 = vmatprep.subr.mxu0 0.0
    %1415 = vmatpush2.msra.mxu0 0.0
    %1416 = vmatprep.subr.mxu0 0.0
    %1417 = vmatpush2.msra.mxu0 0.0
    %1418 = vmatprep.subr.mxu0 0.0
    %1419 = vmatpush2.msra.mxu0 0.0
    %1420 = vmatprep.subr.mxu0 0.0
    %1421 = vmatpush2.msra.mxu0 0.0
    %1422 = vmatprep.mubr.f32.mxu0 0.0
    %1423 = vmatmul.mubr.f32.gmra.mxu0 %v1356
    %v1424 = vpop.f32.mrf.mxu0
    %v1425 = vadd.f32 0.0, %v1424
    %v1426 = vpop.f32.mrf.mxu0
    %1427 = vdwg.mxu0
    %1428 = vrot.lane.b32.xlu0 %v154, 40
    %v1429 = vpop.permute.xlu0 %1428
    %v1432 = vsel %vm162, %v1351, 0
    %1434 = vmatprep.subr.mxu0 0.0
    %1435 = vmatpush1.msra.mxu0 0.0
    %1436 = vmatprep.subr.mxu0 0.0
    %1437 = vmatpush1.msra.mxu0 0.0
    %1438 = vmatprep.subr.mxu0 0.0
    %1439 = vmatpush1.msra.mxu0 0.0
    %1440 = vmatprep.subr.mxu0 0.0
    %1441 = vmatpush1.msra.mxu0 0.0
    %1442 = vmatprep.subr.mxu0 0.0
    %1443 = vmatpush1.msra.mxu0 0.0
    %1444 = vmatprep.subr.mxu0 0.0
    %1445 = vmatpush1.msra.mxu0 0.0
    %1446 = vmatprep.subr.mxu0 0.0
    %1447 = vmatpush1.msra.mxu0 0.0
    %1448 = vmatprep.subr.mxu0 0.0
    %1449 = vmatpush1.msra.mxu0 0.0
    %1450 = vmatprep.subr.mxu0 0.0
    %1451 = vmatpush1.msra.mxu0 0.0
    %1452 = vmatprep.subr.mxu0 0.0
    %1453 = vmatpush1.msra.mxu0 0.0
    %1454 = vmatprep.subr.mxu0 0.0
    %1455 = vmatpush1.msra.mxu0 0.0
    %1456 = vmatprep.subr.mxu0 0.0
    %1457 = vmatpush1.msra.mxu0 0.0
    %1458 = vmatprep.subr.mxu0 0.0
    %1459 = vmatpush1.msra.mxu0 0.0
    %1460 = vmatprep.subr.mxu0 0.0
    %1461 = vmatpush1.msra.mxu0 0.0
    %1462 = vmatprep.subr.mxu0 0.0
    %1463 = vmatpush1.msra.mxu0 0.0
    %1464 = vmatprep.subr.mxu0 0.0
    %1465 = vmatpush1.msra.mxu0 %v1429
    %1466 = vmatprep.subr.mxu0 0.0
    %1467 = vmatpush2.msra.mxu0 0.0
    %1468 = vmatprep.subr.mxu0 0.0
    %1469 = vmatpush2.msra.mxu0 0.0
    %1470 = vmatprep.subr.mxu0 0.0
    %1471 = vmatpush2.msra.mxu0 0.0
    %1472 = vmatprep.subr.mxu0 0.0
    %1473 = vmatpush2.msra.mxu0 0.0
    %1474 = vmatprep.subr.mxu0 0.0
    %1475 = vmatpush2.msra.mxu0 0.0
    %1476 = vmatprep.subr.mxu0 0.0
    %1477 = vmatpush2.msra.mxu0 0.0
    %1478 = vmatprep.subr.mxu0 0.0
    %1479 = vmatpush2.msra.mxu0 0.0
    %1480 = vmatprep.subr.mxu0 0.0
    %1481 = vmatpush2.msra.mxu0 0.0
    %1482 = vmatprep.subr.mxu0 0.0
    %1483 = vmatpush2.msra.mxu0 0.0
    %1484 = vmatprep.subr.mxu0 0.0
    %1485 = vmatpush2.msra.mxu0 0.0
    %1486 = vmatprep.subr.mxu0 0.0
    %1487 = vmatpush2.msra.mxu0 0.0
    %1488 = vmatprep.subr.mxu0 0.0
    %1489 = vmatpush2.msra.mxu0 0.0
    %1490 = vmatprep.subr.mxu0 0.0
    %1491 = vmatpush2.msra.mxu0 0.0
    %1492 = vmatprep.subr.mxu0 0.0
    %1493 = vmatpush2.msra.mxu0 0.0
    %1494 = vmatprep.subr.mxu0 0.0
    %1495 = vmatpush2.msra.mxu0 0.0
    %1496 = vmatprep.subr.mxu0 0.0
    %1497 = vmatpush2.msra.mxu0 0.0
    %1498 = vmatprep.mubr.f32.mxu0 0.0
    %1499 = vmatmul.mubr.f32.gmra.mxu0 %v1432
    %v1500 = vpop.f32.mrf.mxu0
    %v1501 = vadd.f32 0.0, %v1500
    %v1502 = vpop.f32.mrf.mxu0
    %1503 = vdwg.mxu0
    %1506 = vrot.lane.b32.xlu0 %v1425, 24
    %v1507 = vpop.permute.xlu0 %1506
    %1508 = vrot.lane.b32.xlu0 %v1501, 24
    %v1509 = vpop.permute.xlu0 %1508
    %vm1512 = vcmask 261312
    %1513 = vst.msk [vmem:[#allocation2] sm:$0xff] %vm1512, %v1507
    %1514 = vst.msk [vmem:[#allocation2 + $0x8] sm:$0xff] %vm1512, %v1509
    %v1515 = vld [vmem:[#allocation2] sm:$0xff]
    %v1516 = vld [vmem:[#allocation2 + $0x8] sm:$0xff]
    %v1517 = vld [vmem:[#allocation8] sm:$0xff]
    %v1518 = vld [vmem:[#allocation8 + $0x8] sm:$0xff]
    %v1519 = vld [vmem:[#allocation8 + $0x10] sm:$0xff]
    %v1520 = vld [vmem:[#allocation8 + $0x18] sm:$0xff]
    %v1521 = vld [vmem:[%s4] sm:$0x1]
    %v1523 = vlaneseq
    %v1524 = vshrl.u32 %v1523, 7
    %v1525 = vsub.s32 0, %v1524
    %v1526 = vrot.slane %v1521, %v1525
    %v1529 = vsel %vm75, %v1515, 0
    %v1532 = vsel %vm75, %v1516, 0
    %1534 = vmatprep.subr.mxu0 0.0
    %1535 = vmatpush1.msra.mxu0 0.0
    %1536 = vmatprep.subr.mxu0 0.0
    %1537 = vmatpush1.msra.mxu0 0.0
    %1538 = vmatprep.subr.mxu0 0.0
    %1539 = vmatpush1.msra.mxu0 0.0
    %1540 = vmatprep.subr.mxu0 0.0
    %1541 = vmatpush1.msra.mxu0 0.0
    %1542 = vmatprep.subr.mxu0 0.0
    %1543 = vmatpush1.msra.mxu0 0.0
    %1544 = vmatprep.subr.mxu0 0.0
    %1545 = vmatpush1.msra.mxu0 0.0
    %1546 = vmatprep.subr.mxu0 0.0
    %1547 = vmatpush1.msra.mxu0 0.0
    %1548 = vmatprep.subr.mxu0 0.0
    %1549 = vmatpush1.msra.mxu0 0.0
    %1550 = vmatprep.subr.mxu0 0.0
    %1551 = vmatpush1.msra.mxu0 0.0
    %1552 = vmatprep.subr.mxu0 0.0
    %1553 = vmatpush1.msra.mxu0 0.0
    %1554 = vmatprep.subr.mxu0 0.0
    %1555 = vmatpush1.msra.mxu0 0.0
    %1556 = vmatprep.subr.mxu0 0.0
    %1557 = vmatpush1.msra.mxu0 0.0
    %1558 = vmatprep.subr.mxu0 0.0
    %1559 = vmatpush1.msra.mxu0 %v1520
    %1560 = vmatprep.subr.mxu0 0.0
    %1561 = vmatpush1.msra.mxu0 %v1519
    %1562 = vmatprep.subr.mxu0 0.0
    %1563 = vmatpush1.msra.mxu0 %v1518
    %1564 = vmatprep.subr.mxu0 0.0
    %1565 = vmatpush1.msra.mxu0 %v1517
    %1566 = vmatprep.subr.mxu0 0.0
    %1567 = vmatpush2.msra.mxu0 0.0
    %1568 = vmatprep.subr.mxu0 0.0
    %1569 = vmatpush2.msra.mxu0 0.0
    %1570 = vmatprep.subr.mxu0 0.0
    %1571 = vmatpush2.msra.mxu0 0.0
    %1572 = vmatprep.subr.mxu0 0.0
    %1573 = vmatpush2.msra.mxu0 0.0
    %1574 = vmatprep.subr.mxu0 0.0
    %1575 = vmatpush2.msra.mxu0 0.0
    %1576 = vmatprep.subr.mxu0 0.0
    %1577 = vmatpush2.msra.mxu0 0.0
    %1578 = vmatprep.subr.mxu0 0.0
    %1579 = vmatpush2.msra.mxu0 0.0
    %1580 = vmatprep.subr.mxu0 0.0
    %1581 = vmatpush2.msra.mxu0 0.0
    %1582 = vmatprep.subr.mxu0 0.0
    %1583 = vmatpush2.msra.mxu0 0.0
    %1584 = vmatprep.subr.mxu0 0.0
    %1585 = vmatpush2.msra.mxu0 0.0
    %1586 = vmatprep.subr.mxu0 0.0
    %1587 = vmatpush2.msra.mxu0 0.0
    %1588 = vmatprep.subr.mxu0 0.0
    %1589 = vmatpush2.msra.mxu0 0.0
    %1590 = vmatprep.subr.mxu0 0.0
    %1591 = vmatpush2.msra.mxu0 0.0
    %1592 = vmatprep.subr.mxu0 0.0
    %1593 = vmatpush2.msra.mxu0 0.0
    %1594 = vmatprep.subr.mxu0 0.0
    %1595 = vmatpush2.msra.mxu0 0.0
    %1596 = vmatprep.subr.mxu0 0.0
    %1597 = vmatpush2.msra.mxu0 0.0
    %1598 = vmatprep.mubr.f32.mxu0 0.0
    %1599 = vmatmul.mubr.f32.gmra.mxu0 %v1529
    %v1600 = vpop.f32.mrf.mxu0
    %v1601 = vadd.f32 %v1526, %v1600
    %v1602 = vpop.f32.mrf.mxu0
    %1603 = vmatprep.mubr.f32.mxu0 0.0
    %1604 = vmatmul.mubr.f32.gmra.mxu0 %v1532
    %v1605 = vpop.f32.mrf.mxu0
    %v1606 = vadd.f32 %v1526, %v1605
    %v1607 = vpop.f32.mrf.mxu0
    %1608 = vdwg.mxu0
    %1609 = vst.msk [vmem:[#allocation9] sm:$0xff] %vm75, %v1601
    %1610 = vst.msk [vmem:[#allocation9 + $0x8] sm:$0xff] %vm75, %v1606
    // Predicated region
    $region34: #{tpu_custom_call.1} parent=1 // pred_check
      _
    $region35: #{tpu_custom_call.1} parent=1 // pred_check_branch
      %1612 = sbr.rel (0) target = $region37
    $region36: #{tpu_custom_call.1} parent=1 // pred_region
      %s1614 = ssub.s32 256, 256
      %1615 = vsyncadd [#allocation5], %s1614
      %s1616 = sshll.u32 [#allocation9], 4
      %s1617 = int_to_ptr.vmem [resolvable:$true] %s1616
      %1622 = dma.vmem_to_hbm [thread:$0]  %s1617, 256, %s5, [#allocation5], 128, 128, 8
    $region37: #{tpu_custom_call.1} parent=1 // pred_fallthru
      _
    // Predicated region
    $region38: #{tpu_custom_call.1} parent=1 // pred_check
      _
    $region39: #{tpu_custom_call.1} parent=1 // pred_check_branch
      %1624 = sbr.rel (0) target = $region41
    $region40: #{tpu_custom_call.1} parent=1 // pred_region
      %1625 = dma.done [#allocation5], 256
    $region41: #{tpu_custom_call.1} parent=1 // pred_fallthru
      _
    %1626 = vsyncpa [#allocation4], 1
    %1627 = vsyncpa [#allocation7], 1
    %1628 = vsyncpa [#allocation5], 1

</llo_original>
